<compile_context>
chip_gen: v5e
topology: v5e:2x2
jax: 0.10.0
libtpu: 0.0.40
codegen_flags: <defaults>
</compile_context>

<pallas_src>
import collections
import functools
import math

import numpy as np

import jax
import jax.numpy as jnp
from jax import lax
from jax.experimental import pallas as pl
from jax.experimental.pallas import tpu as pltpu

_NEG_INF = -1e30
_LOG1000 = math.log(1000.0)

POEMCfg = collections.namedtuple(
    "POEMCfg",
    ["K", "filter_ent", "filter_plpd", "plpd_threshold",
     "reweight_ent", "reweight_plpd", "margin", "has_probs",
     "tk", "vmem_limit"])


def _pick_tk(D, B, HID, Cp, budget_bytes=20 << 20, max_tk=None):
    """Largest multiple-of-128 divisor of D whose streamed tiles fit the budget."""
    if D % 128 != 0:
        return D
    per_tk = 4 * (B + HID + Cp + 1)            # bf16 tiles, double-buffered
    cap = max(128, budget_bytes // max(per_tk, 1))
    cap = min(D, (cap // 128) * 128)
    if max_tk is not None:
        cap = min(cap, max(128, (int(max_tk) // 128) * 128))
    tk = max(cap, 128)
    while tk >= 128:
        if D % tk == 0:
            return tk
        tk -= 128
    return D


def _vmem_limit_bytes(B, TK, HID, Cp, Kp2, Kp):
    streamed = 2 * 2 * TK * (B + HID + Cp + 1)            # bf16, double-buffered
    resident = 2 * (2 * (HID * Kp2 + Cp * HID)            # bf16 constants
                    + 4 * (HID + Kp2 + Kp))               # f32 biases / probs
    outputs = 2 * 4 * (B * Kp + 8 * Kp)
    scratch = 4 * (2 * B * HID + B * Cp)
    need = streamed + resident + outputs + scratch + (8 << 20)
    return int(min(max(need, 32 << 20), 60 << 20))


# ---------------------------------------------------------------------------
# Fused kernel: clean pass + occluded prime pass + all post-processing
# ---------------------------------------------------------------------------
def _poem_fused_kernel(x_ref, win_ref, pmean_ref, w1_ref, b1_ref, w23_ref,
                       b23_ref, w1win_ref, probs_ref,
                       mix_ref, stats_ref,
                       hacc_ref, oacc_ref, macc_ref, *,
                       K, Kp, margin, filter_ent, filter_plpd, plpd_threshold,
                       rw_ent, rw_plpd, use_reweight, has_probs):
    k = pl.program_id(0)

    @pl.when(k == 0)
    def _init():
        hacc_ref[...] = jnp.zeros_like(hacc_ref)
        oacc_ref[...] = jnp.zeros_like(oacc_ref)
        macc_ref[...] = jnp.zeros_like(macc_ref)

    x = x_ref[...]                       # (B, TK)  bf16
    w1 = w1_ref[...]                     # (TK, HID) bf16
    win = win_ref[...]                   # (1, TK)  bf16 0/1 occlusion window

    # clean pass accumulator
    hacc_ref[...] += jnp.dot(x, w1, preferred_element_type=jnp.float32)
    # window-only contribution (subtracted later for the occluded pass)
    oacc_ref[...] += jnp.dot(x * win, w1, preferred_element_type=jnp.float32)
    # per-(sample, channel) means: x @ (channel one-hot / HW)
    macc_ref[...] += jnp.dot(x, pmean_ref[...],
                             preferred_element_type=jnp.float32)

    @pl.when(k == pl.num_programs(0) - 1)
    def _finalize():
        b1 = b1_ref[...]
        w23 = w23_ref[...]
        b23 = b23_ref[...]

        def heads(pre):
            h = jnp.maximum(pre + b1, 0.0)
            lg = jnp.dot(h.astype(jnp.bfloat16), w23,
                         preferred_element_type=jnp.float32) + b23
            return lg[:, :Kp], lg[:, Kp:]

        # clean model pass
        out_c, outb_c = heads(hacc_ref[...])
        mix = 0.5 * out_c + 0.5 * outb_c

        # occluded ("prime") pass: x@W1 - (x*win)@W1 + means@(swin@W1)
        fill = jnp.dot(macc_ref[...].astype(jnp.bfloat16), w1win_ref[...],
                       preferred_element_type=jnp.float32)
        out_p, outb_p = heads(hacc_ref[...] - oacc_ref[...] + fill)
        mix_p = 0.5 * out_p + 0.5 * outb_p

        col = lax.broadcasted_iota(jnp.int32, mix.shape, 1)
        valid = col < K

        def smax(z):
            zz = jnp.where(valid, z, _NEG_INF)
            mm = jnp.max(zz, axis=1, keepdims=True)
            zs = zz - mm
            ee = jnp.exp(zs)
            ss = jnp.sum(ee, axis=1, keepdims=True)
            sm = ee * pl.reciprocal(ss, approx=True)
            return sm, zs, ss

        # entropy of softmax(mix) -- the clean mixed head
        sm_c, zs_m, s_m = smax(mix)
        logsm = zs_m - jnp.log(s_m)
        ent = -jnp.sum(jnp.where(valid, sm_c * logsm, 0.0),
                       axis=1, keepdims=True)                  # (B, 1)

        p_c, _, _ = smax(out_c)     # clean main-head probs
        p_p, _, _ = smax(out_p)     # prime main-head probs  (first-pass PLPD)
        p_mp, _, _ = smax(mix_p)    # prime mixed-head probs (second-pass PLPD)

        # first-argmax class of the clean main head (raw logits)
        zc = jnp.where(valid, out_c, _NEG_INF)
        lmax = jnp.max(zc, axis=1, keepdims=True)
        cand = jnp.where(zc == lmax, col, Kp)
        cls = jnp.min(cand, axis=1, keepdims=True)
        onehot = (col == cls).astype(jnp.float32)

        pmax = jnp.sum(p_c * onehot, axis=1, keepdims=True)
        plpd1 = pmax - jnp.sum(p_p * onehot, axis=1, keepdims=True)
        plpd2 = pmax - jnp.sum(p_mp * onehot, axis=1, keepdims=True)

        if filter_ent:
            mask1 = ent < margin
        else:
            mask1 = ent <= _LOG1000
        mask1b = ent < margin          # second pass always uses the strict margin

        if filter_plpd:
            mask2 = mask1 & (plpd1 > plpd_threshold)
            mask2b = mask1b & (plpd2 > plpd_threshold)
        else:
            mask2 = mask1 & (plpd1 >= -2.0)
            mask2b = mask1b & (plpd2 >= -2.0)

        if has_probs:
            p = probs_ref[...]                                   # (1, Kp)
            dotp = jnp.sum(jnp.where(valid, p * sm_c, 0.0),
                           axis=1, keepdims=True)
            pn = jnp.sqrt(jnp.sum(p * p, axis=1, keepdims=True))
            sn = jnp.sqrt(jnp.sum(jnp.where(valid, sm_c * sm_c, 0.0),
                                  axis=1, keepdims=True))
            cos = dotp / (jnp.maximum(pn, 1e-8) * jnp.maximum(sn, 1e-8))
            cmask = jnp.abs(cos) < 0.2
            mask_f1 = mask2 & cmask
            mask_f2 = mask2b & cmask
        else:
            mask_f1 = mask2
            mask_f2 = mask2b

        m1 = mask1.astype(jnp.float32)
        mf1 = mask_f1.astype(jnp.float32)
        m1b = mask1b.astype(jnp.float32)
        mf2 = mask_f2.astype(jnp.float32)

        cnt1 = jnp.sum(m1)
        cntf1 = jnp.sum(mf1)
        cnt1b = jnp.sum(m1b)
        cntf2 = jnp.sum(mf2)

        if use_reweight:
            coeff = rw_ent * jnp.exp(-(ent - margin)) + rw_plpd * jnp.exp(plpd1)
        else:
            coeff = jnp.ones_like(ent)
        loss = jnp.sum(ent * coeff * mf1) / jnp.maximum(cntf1, 1.0)

        nm1 = jnp.sum(sm_c * mf1, axis=0, keepdims=True) / jnp.maximum(cntf1, 1.0)
        nm2 = jnp.sum(sm_c * mf2, axis=0, keepdims=True) / jnp.maximum(cntf2, 1.0)

        mix_ref[...] = mix

        row = lax.broadcasted_iota(jnp.int32, stats_ref.shape, 0)
        colp = lax.broadcasted_iota(jnp.int32, stats_ref.shape, 1)
        scalrow = (jnp.where(colp == 0, cnt1, 0.0)
                   + jnp.where(colp == 1, cntf1, 0.0)
                   + jnp.where(colp == 2, cnt1b, 0.0)
                   + jnp.where(colp == 3, cntf2, 0.0)
                   + jnp.where(colp == 4, loss, 0.0))
        stats_ref[...] = (jnp.where(row == 0, nm1, 0.0)
                          + jnp.where(row == 1, nm2, 0.0)
                          + jnp.where(row == 2, scalrow, 0.0))


# ---------------------------------------------------------------------------
# jitted device forward: one pallas_call, one host sync for control scalars
# ---------------------------------------------------------------------------
@functools.partial(jax.jit, static_argnames=("cfg",))
def _device_forward(x, w1, b1, w23, b23, pmean, win, w1win, cur_probs, *, cfg):
    B = x.shape[0]
    x_flat = x.reshape(B, -1).astype(jnp.bfloat16)
    D = x_flat.shape[1]
    HID = w1.shape[1]
    Kp2 = w23.shape[1]
    Kp = Kp2 // 2
    Cp = pmean.shape[1]
    TK = cfg.tk
    nk = D // TK

    kern = functools.partial(
        _poem_fused_kernel, K=cfg.K, Kp=Kp, margin=cfg.margin,
        filter_ent=cfg.filter_ent, filter_plpd=cfg.filter_plpd,
        plpd_threshold=cfg.plpd_threshold,
        rw_ent=cfg.reweight_ent, rw_plpd=cfg.reweight_plpd,
        use_reweight=bool(cfg.reweight_ent or cfg.reweight_plpd),
        has_probs=cfg.has_probs)

    flops = int(2 * B * D * (2 * HID + Cp) + 4 * B * HID * Kp2 + 2 * B * Cp * HID)
    transcendentals = int(6 * B * Kp + 8 * B)
    bytes_accessed = int(2 * (B * D + D * HID + D * Cp + D + HID * Kp2 + Cp * HID)
                         + 4 * (HID + Kp2 + Kp) + 4 * (B * Kp + 8 * Kp))

    mix, stats = pl.pallas_call(
        kern,
        out_shape=(
            jax.ShapeDtypeStruct((B, Kp), jnp.float32),
            jax.ShapeDtypeStruct((8, Kp), jnp.float32),
        ),
        grid=(nk,),
        in_specs=[
            pl.BlockSpec((B, TK), lambda k: (0, k)),        # x tile (bf16)
            pl.BlockSpec((1, TK), lambda k: (0, k)),        # occlusion window (bf16)
            pl.BlockSpec((TK, Cp), lambda k: (k, 0)),       # channel-mean pooling (bf16)
            pl.BlockSpec((TK, HID), lambda k: (k, 0)),      # w1 tile (bf16)
            pl.BlockSpec((1, HID), lambda k: (0, 0)),       # b1
            pl.BlockSpec((HID, Kp2), lambda k: (0, 0)),     # fused [w2|w3] (bf16)
            pl.BlockSpec((1, Kp2), lambda k: (0, 0)),       # fused [b2|b3]
            pl.BlockSpec((Cp, HID), lambda k: (0, 0)),      # W1win = swin @ W1 (bf16)
            pl.BlockSpec((1, Kp), lambda k: (0, 0)),        # current_model_probs
        ],
        out_specs=(
            pl.BlockSpec((B, Kp), lambda k: (0, 0)),
            pl.BlockSpec((8, Kp), lambda k: (0, 0)),
        ),
        scratch_shapes=[pltpu.VMEM((B, HID), jnp.float32),   # hacc (clean)
                        pltpu.VMEM((B, HID), jnp.float32),   # oacc (window part)
                        pltpu.VMEM((B, Cp), jnp.float32)],   # macc (channel sums)
        compiler_params=pltpu.CompilerParams(
            dimension_semantics=("arbitrary",),
            vmem_limit_bytes=cfg.vmem_limit),
        cost_estimate=pl.CostEstimate(flops=flops,
                                      transcendentals=transcendentals,
                                      bytes_accessed=bytes_accessed),
    )(x_flat, win, pmean, w1, b1, w23, b23, w1win, cur_probs.reshape(1, Kp))

    return mix[:, :cfg.K], stats


# ---------------------------------------------------------------------------
# POEM glue (mirrors the reference control flow; forward-only)
# ---------------------------------------------------------------------------
def update_ema(ema, new_value):
    return new_value if ema is None else 0.9 * ema + 0.1 * new_value


class POEMPallas:
    """Pallas/JAX counterpart of the POEM nn.Module (targets=None, flag=True)."""

    def __init__(self, params, args, steps=1,
                 POEM_margin=0.5 * math.log(1000),
                 margin_e0=0.4 * math.log(1000),
                 max_tk=None):
        self.args = dict(args)
        self.steps = steps
        self.POEM_margin = POEM_margin
        self.margin_e0 = margin_e0
        self.max_tk = max_tk
        self.ema = None
        self.current_model_probs = None

        w1 = np.asarray(params["w1"], np.float32)
        b1 = np.asarray(params["b1"], np.float32).reshape(1, -1)
        w2 = np.asarray(params["w2"], np.float32)
        b2 = np.asarray(params["b2"], np.float32).reshape(-1)
        w3 = np.asarray(params["w3"], np.float32)
        b3 = np.asarray(params["b3"], np.float32).reshape(-1)

        self.D, self.HID = w1.shape
        self.K = w2.shape[1]
        # pad the class dim to a lane-dense multiple of 128 and fuse both heads
        self.Kp = max(128, ((self.K + 127) // 128) * 128)
        w23 = np.zeros((self.HID, 2 * self.Kp), np.float32)
        w23[:, :self.K] = w2
        w23[:, self.Kp:self.Kp + self.K] = w3
        b23 = np.zeros((1, 2 * self.Kp), np.float32)
        b23[0, :self.K] = b2
        b23[0, self.Kp:self.Kp + self.K] = b3

        self._w1_np = w1                                  # f32 copy for W1win
        self.w1 = jnp.asarray(w1, jnp.bfloat16)           # MXU operand
        self.b1 = jnp.asarray(b1, jnp.float32)
        self.w23 = jnp.asarray(w23, jnp.bfloat16)
        self.b23 = jnp.asarray(b23, jnp.float32)

        self._const_cache = {}

    # precomputed occlusion constants (no //, % inside the kernel)
    def _occ_consts(self, shape):
        key = tuple(int(s) for s in shape[1:])
        if key in self._const_cache:
            return self._const_cache[key]
        C, H, W = key
        D = C * H * W
        assert D == self.D, "input spatial size does not match the model"
        if self.args.get("aug_type", "occ") != "occ":
            # TODO(synk): 'patch'/'pixel' augmentation (random resort / resize) not ported.
            raise NotImplementedError("only aug_type='occ' is implemented")
        HW = H * W
        rs = int(self.args["row_start"])
        cs = int(self.args["column_start"])
        occ = int(self.args["occlusion_size"])
        ch = np.arange(D) // HW
        pos = np.arange(D) % HW
        row, colw = pos // W, pos % W
        inwin = ((row >= rs) & (row < rs + occ) &
                 (colw >= cs) & (colw < cs + occ)).astype(np.float32)
        Cp = ((C + 7) // 8) * 8
        chan_oh = (np.arange(Cp)[None, :] == ch[:, None]).astype(np.float32)  # (D, Cp)
        pmean = chan_oh / float(HW)                 # x @ pmean -> channel means
        swin = chan_oh.T * inwin[None, :]           # (Cp, D) window scatter
        w1win = swin @ self._w1_np                  # (Cp, HID) precomputed correction
        consts = (jnp.asarray(pmean, jnp.bfloat16),
                  jnp.asarray(inwin.reshape(1, D), jnp.bfloat16),
                  jnp.asarray(w1win, jnp.bfloat16),
                  Cp)
        self._const_cache[key] = consts
        return consts

    def _forward_and_adapt(self, x):
        pmean, win, w1win, Cp = self._occ_consts(x.shape)
        B = int(x.shape[0])
        has_probs = self.current_model_probs is not None
        tk = _pick_tk(self.D, B, self.HID, Cp, max_tk=self.max_tk)
        vmem_limit = _vmem_limit_bytes(B, tk, self.HID, Cp, 2 * self.Kp, self.Kp)
        cfg = POEMCfg(K=self.K,
                      filter_ent=bool(self.args["filter_ent"]),
                      filter_plpd=bool(self.args["filter_plpd"]),
                      plpd_threshold=float(self.args["plpd_threshold"]),
                      reweight_ent=float(self.args["reweight_ent"]),
                      reweight_plpd=float(self.args["reweight_plpd"]),
                      margin=float(self.margin_e0),
                      has_probs=has_probs,
                      tk=int(tk),
                      vmem_limit=int(vmem_limit))
        cur = (self.current_model_probs if has_probs
               else jnp.zeros((self.Kp,), jnp.float32))

        mix_true, stats = _device_forward(
            x, self.w1, self.b1, self.w23, self.b23, pmean, win, w1win, cur,
            cfg=cfg)

        # single device->host sync for all control scalars
        s = np.asarray(jax.device_get(stats), np.float32)
        cnt1, cntf1, cnt1b, cntf2, loss = (float(s[2, 0]), float(s[2, 1]),
                                           float(s[2, 2]), float(s[2, 3]),
                                           float(s[2, 4]))
        nm1 = jnp.asarray(s[0])                       # masked-mean softmax, pass 1
        nm2 = jnp.asarray(s[1])                       # masked-mean softmax, pass 2
        backward = int(cnt1)
        ema = self.ema
        reset_flag = False

        if backward == 0:
            return mix_true, 0, 0, ema, reset_flag, self.current_model_probs

        # first-pass update_model_probs (masked mean computed on device)
        if has_probs:
            updated = (self.current_model_probs if cntf1 == 0
                       else 0.9 * self.current_model_probs + 0.1 * nm1)
        else:
            updated = None if cntf1 == 0 else nm1

        if int(cntf1) == 0:
            return mix_true, backward, 0, ema, reset_flag, updated

        if not math.isnan(loss):
            ema = update_ema(ema, loss)
        # TODO(synk): loss.backward() + optimizer.step() (gradient update) has no
        # forward-only Pallas equivalent; parameters stay unchanged.

        if ema is not None and ema < 0.2:
            return mix_true, 0, 0, ema, True, updated

        # "second model pass" of the reference: parameters are unchanged, so its
        # logits/softmax/entropy are identical to the first pass; only the masks
        # (strict entropy margin + PLPD on the mixed prime head) differ.
        if int(cnt1b) == 0:
            return mix_true, backward, 0, ema, reset_flag, updated

        if has_probs:
            updated2 = (self.current_model_probs if cntf2 == 0
                        else 0.9 * self.current_model_probs + 0.1 * nm2)
            # TODO(synk): branch_update_first / iterative branch re-adaptation need
            # autograd and optimizer state; not translatable to forward-only kernels.
            return mix_true, backward, 0, ema, reset_flag, updated2
        else:
            updated2 = None if cntf2 == 0 else nm2
            return mix_true, backward, 0, ema, reset_flag, updated2

    def forward(self, x, iter_):
        outputs, backward, final_backward = None, 0, 0
        for _ in range(self.steps):
            (outputs, backward, final_backward, ema, reset_flag,
             updated_probs) = self._forward_and_adapt(x)
            self.current_model_probs = updated_probs
            if reset_flag:
                # TODO(synk): model/optimizer state reload on reset is host-side
                # bookkeeping; parameters are already unchanged in this port.
                self.ema = ema
        return outputs, backward, final_backward, 0, 0


# ---------------------------------------------------------------------------
# demo
# ---------------------------------------------------------------------------
if __name__ == "__main__":
    B, C, H, W = 8, 4, 16, 16
    HID, K = 128, 10
    D = C * H * W

    key = jax.random.PRNGKey(0)
    kx, kw1, kw2, kw3 = jax.random.split(key, 4)
    x = jax.random.normal(kx, (B, C, H, W), dtype=jnp.float32)

    params = {
        "w1": jax.random.normal(kw1, (D, HID), jnp.float32) / math.sqrt(D),
        "b1": jnp.zeros((HID,), jnp.float32),
        "w2": jax.random.normal(kw2, (HID, K), jnp.float32) / math.sqrt(HID),
        "b2": jnp.zeros((K,), jnp.float32),
        "w3": jax.random.normal(kw3, (HID, K), jnp.float32) / math.sqrt(HID),
        "b3": jnp.zeros((K,), jnp.float32),
    }

    args = dict(
        filter_ent=True,
        filter_plpd=False,
        plpd_threshold=0.2,
        reweight_ent=1.0,
        reweight_plpd=1.0,
        aug_type="occ",
        occlusion_size=8,
        row_start=4,
        column_start=4,
    )

    # max_tk=256 so the demo exercises the multi-step D-reduction grid (nk = 4)
    poem = POEMPallas(params, args, steps=1, max_tk=256)

    outputs, backward, final_backward, _, _ = poem.forward(x, iter_=0)
    jax.block_until_ready(outputs)
    assert outputs.shape == (B, K)

    # second call exercises the current_model_probs (cosine-filter) path
    outputs2, backward2, _, _, _ = poem.forward(x, iter_=1)
    jax.block_until_ready(outputs2)
    assert outputs2.shape == (B, K)

    print("KERNEL_OK")
</pallas_src>

<mosaic_0001>
module attributes {stable_mosaic.version = 11 : i64} {
  func.func @_poem_fused_kernel(%arg0: i32, %arg1: memref<8x256xbf16, #tpu.memory_space<vmem>>, %arg2: memref<1x256xbf16, #tpu.memory_space<vmem>>, %arg3: memref<256x8xbf16, #tpu.memory_space<vmem>>, %arg4: memref<256x128xbf16, #tpu.memory_space<vmem>>, %arg5: memref<1x128xf32, #tpu.memory_space<vmem>>, %arg6: memref<128x256xbf16, #tpu.memory_space<vmem>>, %arg7: memref<1x256xf32, #tpu.memory_space<vmem>>, %arg8: memref<8x128xbf16, #tpu.memory_space<vmem>>, %arg9: memref<1x128xf32, #tpu.memory_space<vmem>>, %arg10: memref<8x128xf32, #tpu.memory_space<vmem>>, %arg11: memref<8x128xf32, #tpu.memory_space<vmem>>, %arg12: memref<8x128xf32, #tpu.memory_space<vmem>>, %arg13: memref<8x128xf32, #tpu.memory_space<vmem>>, %arg14: memref<8x8xf32, #tpu.memory_space<vmem>>) attributes {dimension_semantics = [#tpu.dimension_semantics<arbitrary>], iteration_bounds = array<i64: 4>, scalar_prefetch = 0 : i64, scratch_operands = 3 : i64, tpu.core_type = #tpu.core_type<tc>, window_params = [{transform_indices = @transform_0, window_bounds = array<i64: 8, 256>}, {transform_indices = @transform_1, window_bounds = array<i64: 1, 256>}, {transform_indices = @transform_2, window_bounds = array<i64: 256, 8>}, {transform_indices = @transform_3, window_bounds = array<i64: 256, 128>}, {pipeline_mode = #tpu.pipeline_mode<synchronous>, transform_indices = @transform_4, window_bounds = array<i64: 1, 128>}, {pipeline_mode = #tpu.pipeline_mode<synchronous>, transform_indices = @transform_5, window_bounds = array<i64: 128, 256>}, {pipeline_mode = #tpu.pipeline_mode<synchronous>, transform_indices = @transform_6, window_bounds = array<i64: 1, 256>}, {pipeline_mode = #tpu.pipeline_mode<synchronous>, transform_indices = @transform_7, window_bounds = array<i64: 8, 128>}, {pipeline_mode = #tpu.pipeline_mode<synchronous>, transform_indices = @transform_8, window_bounds = array<i64: 1, 128>}, {pipeline_mode = #tpu.pipeline_mode<synchronous>, transform_indices = @transform_9, window_bounds = array<i64: 8, 128>}, {pipeline_mode = #tpu.pipeline_mode<synchronous>, transform_indices = @transform_10, window_bounds = array<i64: 8, 128>}]} {
    %c0_i32 = arith.constant 0 : i32
    %0 = arith.cmpi eq, %arg0, %c0_i32 : i32
    %1 = arith.extui %0 : i1 to i32
    %c0_i32_0 = arith.constant 0 : i32
    %2 = arith.cmpi ne, %1, %c0_i32_0 : i32
    scf.if %2 {
      %cst_23 = arith.constant 0.000000e+00 : f32
      %24 = vector.broadcast %cst_23 : f32 to vector<8x128xf32>
      %c0_24 = arith.constant 0 : index
      %c0_25 = arith.constant 0 : index
      %25 = vector.load %arg12[%c0_24, %c0_25] : memref<8x128xf32, #tpu.memory_space<vmem>>, vector<8x128xf32>
      tpu.vector_store %arg12[%c0_24, %c0_25], %24 {strides = array<i32>} : memref<8x128xf32, #tpu.memory_space<vmem>>, vector<8x128xf32>,
      %cst_26 = arith.constant 0.000000e+00 : f32
      %26 = vector.broadcast %cst_26 : f32 to vector<8x128xf32>
      %c0_27 = arith.constant 0 : index
      %c0_28 = arith.constant 0 : index
      %27 = vector.load %arg13[%c0_27, %c0_28] : memref<8x128xf32, #tpu.memory_space<vmem>>, vector<8x128xf32>
      tpu.vector_store %arg13[%c0_27, %c0_28], %26 {strides = array<i32>} : memref<8x128xf32, #tpu.memory_space<vmem>>, vector<8x128xf32>,
      %cst_29 = arith.constant 0.000000e+00 : f32
      %28 = vector.broadcast %cst_29 : f32 to vector<8x8xf32>
      %c0_30 = arith.constant 0 : index
      %c0_31 = arith.constant 0 : index
      %29 = vector.load %arg14[%c0_30, %c0_31] : memref<8x8xf32, #tpu.memory_space<vmem>>, vector<8x8xf32>
      tpu.vector_store %arg14[%c0_30, %c0_31], %28 {strides = array<i32>} : memref<8x8xf32, #tpu.memory_space<vmem>>, vector<8x8xf32>,
    } else {
    }
    %c0 = arith.constant 0 : index
    %c0_1 = arith.constant 0 : index
    %3 = vector.load %arg1[%c0, %c0_1] : memref<8x256xbf16, #tpu.memory_space<vmem>>, vector<8x256xbf16>
    %c0_2 = arith.constant 0 : index
    %c0_3 = arith.constant 0 : index
    %4 = vector.load %arg4[%c0_2, %c0_3] : memref<256x128xbf16, #tpu.memory_space<vmem>>, vector<256x128xbf16>
    %c0_4 = arith.constant 0 : index
    %c0_5 = arith.constant 0 : index
    %5 = vector.load %arg2[%c0_4, %c0_5] : memref<1x256xbf16, #tpu.memory_space<vmem>>, vector<1x256xbf16>
    %c0_6 = arith.constant 0 : index
    %c0_7 = arith.constant 0 : index
    %6 = vector.load %arg12[%c0_6, %c0_7] : memref<8x128xf32, #tpu.memory_space<vmem>>, vector<8x128xf32>
    %cst = arith.constant dense<0.000000e+00> : vector<8x128xf32>
    %7 = tpu.matmul %3, %4, %cst {dimension_numbers = #tpu.dot_dimension_numbers<[1], [0], [0], [1], [0, 0, 1, 1], [], []>} : vector<8x256xbf16>, vector<256x128xbf16>, vector<8x128xf32> -> vector<8x128xf32>
    %8 = arith.addf %6, %7 : vector<8x128xf32>
    %c0_8 = arith.constant 0 : index
    %c0_9 = arith.constant 0 : index
    %9 = vector.load %arg12[%c0_8, %c0_9] : memref<8x128xf32, #tpu.memory_space<vmem>>, vector<8x128xf32>
    tpu.vector_store %arg12[%c0_8, %c0_9], %8 {strides = array<i32>} : memref<8x128xf32, #tpu.memory_space<vmem>>, vector<8x128xf32>,
    %c0_10 = arith.constant 0 : index
    %c0_11 = arith.constant 0 : index
    %10 = vector.load %arg13[%c0_10, %c0_11] : memref<8x128xf32, #tpu.memory_space<vmem>>, vector<8x128xf32>
    %11 = vector.broadcast %5 : vector<1x256xbf16> to vector<8x256xbf16>
    %12 = arith.mulf %3, %11 : vector<8x256xbf16>
    %cst_12 = arith.constant dense<0.000000e+00> : vector<8x128xf32>
    %13 = tpu.matmul %12, %4, %cst_12 {dimension_numbers = #tpu.dot_dimension_numbers<[1], [0], [0], [1], [0, 0, 1, 1], [], []>} : vector<8x256xbf16>, vector<256x128xbf16>, vector<8x128xf32> -> vector<8x128xf32>
    %14 = arith.addf %10, %13 : vector<8x128xf32>
    %c0_13 = arith.constant 0 : index
    %c0_14 = arith.constant 0 : index
    %15 = vector.load %arg13[%c0_13, %c0_14] : memref<8x128xf32, #tpu.memory_space<vmem>>, vector<8x128xf32>
    tpu.vector_store %arg13[%c0_13, %c0_14], %14 {strides = array<i32>} : memref<8x128xf32, #tpu.memory_space<vmem>>, vector<8x128xf32>,
    %c0_15 = arith.constant 0 : index
    %c0_16 = arith.constant 0 : index
    %16 = vector.load %arg14[%c0_15, %c0_16] : memref<8x8xf32, #tpu.memory_space<vmem>>, vector<8x8xf32>
    %c0_17 = arith.constant 0 : index
    %c0_18 = arith.constant 0 : index
    %17 = vector.load %arg3[%c0_17, %c0_18] : memref<256x8xbf16, #tpu.memory_space<vmem>>, vector<256x8xbf16>
    %cst_19 = arith.constant dense<0.000000e+00> : vector<8x8xf32>
    %18 = tpu.matmul %3, %17, %cst_19 {dimension_numbers = #tpu.dot_dimension_numbers<[1], [0], [0], [1], [0, 0, 1, 1], [], []>} : vector<8x256xbf16>, vector<256x8xbf16>, vector<8x8xf32> -> vector<8x8xf32>
    %19 = arith.addf %16, %18 : vector<8x8xf32>
    %c0_20 = arith.constant 0 : index
    %c0_21 = arith.constant 0 : index
    %20 = vector.load %arg14[%c0_20, %c0_21] : memref<8x8xf32, #tpu.memory_space<vmem>>, vector<8x8xf32>
    tpu.vector_store %arg14[%c0_20, %c0_21], %19 {strides = array<i32>} : memref<8x8xf32, #tpu.memory_space<vmem>>, vector<8x8xf32>,
    %c3_i32 = arith.constant 3 : i32
    %21 = arith.cmpi eq, %arg0, %c3_i32 : i32
    %22 = arith.extui %21 : i1 to i32
    %c0_i32_22 = arith.constant 0 : i32
    %23 = arith.cmpi ne, %22, %c0_i32_22 : i32
    scf.if %23 {
      %c0_23 = arith.constant 0 : index
      %c0_24 = arith.constant 0 : index
      %24 = vector.load %arg5[%c0_23, %c0_24] : memref<1x128xf32, #tpu.memory_space<vmem>>, vector<1x128xf32>
      %c0_25 = arith.constant 0 : index
      %c0_26 = arith.constant 0 : index
      %25 = vector.load %arg6[%c0_25, %c0_26] : memref<128x256xbf16, #tpu.memory_space<vmem>>, vector<128x256xbf16>
      %c0_27 = arith.constant 0 : index
      %c0_28 = arith.constant 0 : index
      %26 = vector.load %arg7[%c0_27, %c0_28] : memref<1x256xf32, #tpu.memory_space<vmem>>, vector<1x256xf32>
      %c0_29 = arith.constant 0 : index
      %c0_30 = arith.constant 0 : index
      %27 = vector.load %arg12[%c0_29, %c0_30] : memref<8x128xf32, #tpu.memory_space<vmem>>, vector<8x128xf32>
      %28 = vector.broadcast %24 : vector<1x128xf32> to vector<8x128xf32>
      %29 = arith.addf %27, %28 : vector<8x128xf32>
      %cst_31 = arith.constant 0.000000e+00 : f32
      %30 = vector.broadcast %cst_31 : f32 to vector<8x128xf32>
      %31 = arith.maximumf %29, %30 : vector<8x128xf32>
      %32 = arith.truncf %31 : vector<8x128xf32> to vector<8x128xbf16>
      %cst_32 = arith.constant dense<0.000000e+00> : vector<8x256xf32>
      %33 = tpu.matmul %32, %25, %cst_32 {dimension_numbers = #tpu.dot_dimension_numbers<[1], [0], [0], [1], [0, 0, 1, 1], [], []>} : vector<8x128xbf16>, vector<128x256xbf16>, vector<8x256xf32> -> vector<8x256xf32>
      %34 = vector.broadcast %26 : vector<1x256xf32> to vector<8x256xf32>
      %35 = arith.addf %33, %34 : vector<8x256xf32>
      %36 = vector.extract_strided_slice %35 {offsets = [0, 0], sizes = [8, 128], strides = [1, 1]} : vector<8x256xf32> to vector<8x128xf32>
      %37 = vector.extract_strided_slice %35 {offsets = [0, 128], sizes = [8, 128], strides = [1, 1]} : vector<8x256xf32> to vector<8x128xf32>
      %cst_33 = arith.constant 5.000000e-01 : f32
      %38 = vector.broadcast %cst_33 : f32 to vector<8x128xf32>
      %39 = arith.mulf %38, %36 : vector<8x128xf32>
      %cst_34 = arith.constant 5.000000e-01 : f32
      %40 = vector.broadcast %cst_34 : f32 to vector<8x128xf32>
      %41 = arith.mulf %40, %37 : vector<8x128xf32>
      %42 = arith.addf %39, %41 : vector<8x128xf32>
      %c0_35 = arith.constant 0 : index
      %c0_36 = arith.constant 0 : index
      %43 = vector.load %arg14[%c0_35, %c0_36] : memref<8x8xf32, #tpu.memory_space<vmem>>, vector<8x8xf32>
      %44 = arith.truncf %43 : vector<8x8xf32> to vector<8x8xbf16>
      %c0_37 = arith.constant 0 : index
      %c0_38 = arith.constant 0 : index
      %45 = vector.load %arg8[%c0_37, %c0_38] : memref<8x128xbf16, #tpu.memory_space<vmem>>, vector<8x128xbf16>
      %cst_39 = arith.constant dense<0.000000e+00> : vector<8x128xf32>
      %46 = tpu.matmul %44, %45, %cst_39 {dimension_numbers = #tpu.dot_dimension_numbers<[1], [0], [0], [1], [0, 0, 1, 1], [], []>} : vector<8x8xbf16>, vector<8x128xbf16>, vector<8x128xf32> -> vector<8x128xf32>
      %c0_40 = arith.constant 0 : index
      %c0_41 = arith.constant 0 : index
      %47 = vector.load %arg12[%c0_40, %c0_41] : memref<8x128xf32, #tpu.memory_space<vmem>>, vector<8x128xf32>
      %c0_42 = arith.constant 0 : index
      %c0_43 = arith.constant 0 : index
      %48 = vector.load %arg13[%c0_42, %c0_43] : memref<8x128xf32, #tpu.memory_space<vmem>>, vector<8x128xf32>
      %49 = arith.subf %47, %48 : vector<8x128xf32>
      %50 = arith.addf %49, %46 : vector<8x128xf32>
      %51 = vector.broadcast %24 : vector<1x128xf32> to vector<8x128xf32>
      %52 = arith.addf %50, %51 : vector<8x128xf32>
      %cst_44 = arith.constant 0.000000e+00 : f32
      %53 = vector.broadcast %cst_44 : f32 to vector<8x128xf32>
      %54 = arith.maximumf %52, %53 : vector<8x128xf32>
      %55 = arith.truncf %54 : vector<8x128xf32> to vector<8x128xbf16>
      %cst_45 = arith.constant dense<0.000000e+00> : vector<8x256xf32>
      %56 = tpu.matmul %55, %25, %cst_45 {dimension_numbers = #tpu.dot_dimension_numbers<[1], [0], [0], [1], [0, 0, 1, 1], [], []>} : vector<8x128xbf16>, vector<128x256xbf16>, vector<8x256xf32> -> vector<8x256xf32>
      %57 = vector.broadcast %26 : vector<1x256xf32> to vector<8x256xf32>
      %58 = arith.addf %56, %57 : vector<8x256xf32>
      %59 = vector.extract_strided_slice %58 {offsets = [0, 0], sizes = [8, 128], strides = [1, 1]} : vector<8x256xf32> to vector<8x128xf32>
      %60 = vector.extract_strided_slice %58 {offsets = [0, 128], sizes = [8, 128], strides = [1, 1]} : vector<8x256xf32> to vector<8x128xf32>
      %cst_46 = arith.constant 5.000000e-01 : f32
      %61 = vector.broadcast %cst_46 : f32 to vector<8x128xf32>
      %62 = arith.mulf %61, %59 : vector<8x128xf32>
      %cst_47 = arith.constant 5.000000e-01 : f32
      %63 = vector.broadcast %cst_47 : f32 to vector<8x128xf32>
      %64 = arith.mulf %63, %60 : vector<8x128xf32>
      %65 = arith.addf %62, %64 : vector<8x128xf32>
      %66 = tpu.iota {dimensions = array<i32: 1>} : vector<8x128xi32>
      %c10_i32 = arith.constant 10 : i32
      %67 = vector.broadcast %c10_i32 : i32 to vector<8x128xi32>
      %68 = arith.cmpi slt, %66, %67 : vector<8x128xi32>
      %cst_48 = arith.constant -1.000000e+30 : f32
      %69 = vector.broadcast %cst_48 : f32 to vector<8x128xf32>
      %70 = arith.select %68, %42, %69 : vector<8x128xi1>, vector<8x128xf32>
      %cst_49 = arith.constant dense<0xFF800000> : vector<8xf32>
      %71 = vector.multi_reduction <maximumf>, %70, %cst_49 [1] : vector<8x128xf32> to vector<8xf32>
      %72 = vector.shape_cast %71 : vector<8xf32> to vector<8x1xf32>
      %73 = vector.broadcast %72 : vector<8x1xf32> to vector<8x128xf32>
      %74 = arith.subf %70, %73 : vector<8x128xf32>
      %75 = math.exp %74 : vector<8x128xf32>
      %cst_50 = arith.constant dense<0.000000e+00> : vector<8xf32>
      %76 = vector.multi_reduction <add>, %75, %cst_50 [1] : vector<8x128xf32> to vector<8xf32>
      %77 = vector.shape_cast %76 : vector<8xf32> to vector<8x1xf32>
      %78 = tpu.reciprocal %77 {approx = true} : vector<8x1xf32> -> vector<8x1xf32>
      %79 = vector.broadcast %78 : vector<8x1xf32> to vector<8x128xf32>
      %80 = arith.mulf %75, %79 : vector<8x128xf32>
      %81 = math.log %77 : vector<8x1xf32>
      %82 = vector.broadcast %81 : vector<8x1xf32> to vector<8x128xf32>
      %83 = arith.subf %74, %82 : vector<8x128xf32>
      %84 = arith.mulf %80, %83 : vector<8x128xf32>
      %cst_51 = arith.constant 0.000000e+00 : f32
      %85 = vector.broadcast %cst_51 : f32 to vector<8x128xf32>
      %86 = arith.select %68, %84, %85 : vector<8x128xi1>, vector<8x128xf32>
      %cst_52 = arith.constant dense<0.000000e+00> : vector<8xf32>
      %87 = vector.multi_reduction <add>, %86, %cst_52 [1] : vector<8x128xf32> to vector<8xf32>
      %88 = vector.shape_cast %87 : vector<8xf32> to vector<8x1xf32>
      %cst_53 = arith.constant 0.000000e+00 : f32
      %89 = vector.broadcast %cst_53 : f32 to vector<8x1xf32>
      %90 = arith.subf %89, %88 : vector<8x1xf32>
      %cst_54 = arith.constant -1.000000e+30 : f32
      %91 = vector.broadcast %cst_54 : f32 to vector<8x128xf32>
      %92 = arith.select %68, %36, %91 : vector<8x128xi1>, vector<8x128xf32>
      %cst_55 = arith.constant dense<0xFF800000> : vector<8xf32>
      %93 = vector.multi_reduction <maximumf>, %92, %cst_55 [1] : vector<8x128xf32> to vector<8xf32>
      %94 = vector.shape_cast %93 : vector<8xf32> to vector<8x1xf32>
      %95 = vector.broadcast %94 : vector<8x1xf32> to vector<8x128xf32>
      %96 = arith.subf %92, %95 : vector<8x128xf32>
      %97 = math.exp %96 : vector<8x128xf32>
      %cst_56 = arith.constant dense<0.000000e+00> : vector<8xf32>
      %98 = vector.multi_reduction <add>, %97, %cst_56 [1] : vector<8x128xf32> to vector<8xf32>
      %99 = vector.shape_cast %98 : vector<8xf32> to vector<8x1xf32>
      %100 = tpu.reciprocal %99 {approx = true} : vector<8x1xf32> -> vector<8x1xf32>
      %101 = vector.broadcast %100 : vector<8x1xf32> to vector<8x128xf32>
      %102 = arith.mulf %97, %101 : vector<8x128xf32>
      %cst_57 = arith.constant -1.000000e+30 : f32
      %103 = vector.broadcast %cst_57 : f32 to vector<8x128xf32>
      %104 = arith.select %68, %59, %103 : vector<8x128xi1>, vector<8x128xf32>
      %cst_58 = arith.constant dense<0xFF800000> : vector<8xf32>
      %105 = vector.multi_reduction <maximumf>, %104, %cst_58 [1] : vector<8x128xf32> to vector<8xf32>
      %106 = vector.shape_cast %105 : vector<8xf32> to vector<8x1xf32>
      %107 = vector.broadcast %106 : vector<8x1xf32> to vector<8x128xf32>
      %108 = arith.subf %104, %107 : vector<8x128xf32>
      %109 = math.exp %108 : vector<8x128xf32>
      %cst_59 = arith.constant dense<0.000000e+00> : vector<8xf32>
      %110 = vector.multi_reduction <add>, %109, %cst_59 [1] : vector<8x128xf32> to vector<8xf32>
      %111 = vector.shape_cast %110 : vector<8xf32> to vector<8x1xf32>
      %112 = tpu.reciprocal %111 {approx = true} : vector<8x1xf32> -> vector<8x1xf32>
      %113 = vector.broadcast %112 : vector<8x1xf32> to vector<8x128xf32>
      %114 = arith.mulf %109, %113 : vector<8x128xf32>
      %cst_60 = arith.constant -1.000000e+30 : f32
      %115 = vector.broadcast %cst_60 : f32 to vector<8x128xf32>
      %116 = arith.select %68, %65, %115 : vector<8x128xi1>, vector<8x128xf32>
      %cst_61 = arith.constant dense<0xFF800000> : vector<8xf32>
      %117 = vector.multi_reduction <maximumf>, %116, %cst_61 [1] : vector<8x128xf32> to vector<8xf32>
      %118 = vector.shape_cast %117 : vector<8xf32> to vector<8x1xf32>
      %119 = vector.broadcast %118 : vector<8x1xf32> to vector<8x128xf32>
      %120 = arith.subf %116, %119 : vector<8x128xf32>
      %121 = math.exp %120 : vector<8x128xf32>
      %cst_62 = arith.constant dense<0.000000e+00> : vector<8xf32>
      %122 = vector.multi_reduction <add>, %121, %cst_62 [1] : vector<8x128xf32> to vector<8xf32>
      %123 = vector.shape_cast %122 : vector<8xf32> to vector<8x1xf32>
      %124 = tpu.reciprocal %123 {approx = true} : vector<8x1xf32> -> vector<8x1xf32>
      %125 = vector.broadcast %124 : vector<8x1xf32> to vector<8x128xf32>
      %126 = arith.mulf %121, %125 : vector<8x128xf32>
      %cst_63 = arith.constant -1.000000e+30 : f32
      %127 = vector.broadcast %cst_63 : f32 to vector<8x128xf32>
      %128 = arith.select %68, %36, %127 : vector<8x128xi1>, vector<8x128xf32>
      %cst_64 = arith.constant dense<0xFF800000> : vector<8xf32>
      %129 = vector.multi_reduction <maximumf>, %128, %cst_64 [1] : vector<8x128xf32> to vector<8xf32>
      %130 = vector.shape_cast %129 : vector<8xf32> to vector<8x1xf32>
      %131 = vector.broadcast %130 : vector<8x1xf32> to vector<8x128xf32>
      %132 = arith.cmpf oeq, %128, %131 : vector<8x128xf32>
      %c128_i32 = arith.constant 128 : i32
      %133 = vector.broadcast %c128_i32 : i32 to vector<8x128xi32>
      %134 = arith.select %132, %66, %133 : vector<8x128xi1>, vector<8x128xi32>
      %cst_65 = arith.constant dense<2147483647> : vector<8xi32>
      %135 = vector.multi_reduction <minsi>, %134, %cst_65 [1] : vector<8x128xi32> to vector<8xi32>
      %136 = vector.shape_cast %135 : vector<8xi32> to vector<8x1xi32>
      %137 = vector.broadcast %136 : vector<8x1xi32> to vector<8x128xi32>
      %138 = arith.cmpi eq, %66, %137 : vector<8x128xi32>
      %139 = arith.extui %138 : vector<8x128xi1> to vector<8x128xi32>
      %140 = arith.sitofp %139 : vector<8x128xi32> to vector<8x128xf32>
      %141 = arith.mulf %102, %140 : vector<8x128xf32>
      %cst_66 = arith.constant dense<0.000000e+00> : vector<8xf32>
      %142 = vector.multi_reduction <add>, %141, %cst_66 [1] : vector<8x128xf32> to vector<8xf32>
      %143 = vector.shape_cast %142 : vector<8xf32> to vector<8x1xf32>
      %144 = arith.mulf %114, %140 : vector<8x128xf32>
      %cst_67 = arith.constant dense<0.000000e+00> : vector<8xf32>
      %145 = vector.multi_reduction <add>, %144, %cst_67 [1] : vector<8x128xf32> to vector<8xf32>
      %146 = vector.shape_cast %145 : vector<8xf32> to vector<8x1xf32>
      %147 = arith.subf %143, %146 : vector<8x1xf32>
      %148 = arith.mulf %126, %140 : vector<8x128xf32>
      %cst_68 = arith.constant dense<0.000000e+00> : vector<8xf32>
      %149 = vector.multi_reduction <add>, %148, %cst_68 [1] : vector<8x128xf32> to vector<8xf32>
      %150 = vector.shape_cast %149 : vector<8xf32> to vector<8x1xf32>
      %151 = arith.subf %143, %150 : vector<8x1xf32>
      %cst_69 = arith.constant 2.76310205 : f32
      %152 = vector.broadcast %cst_69 : f32 to vector<8x1xf32>
      %153 = arith.cmpf olt, %90, %152 : vector<8x1xf32>
      %cst_70 = arith.constant 2.76310205 : f32
      %154 = vector.broadcast %cst_70 : f32 to vector<8x1xf32>
      %155 = arith.cmpf olt, %90, %154 : vector<8x1xf32>
      %cst_71 = arith.constant -2.000000e+00 : f32
      %156 = vector.broadcast %cst_71 : f32 to vector<8x1xf32>
      %157 = arith.cmpf oge, %147, %156 : vector<8x1xf32>
      %158 = arith.andi %153, %157 : vector<8x1xi1>
      %cst_72 = arith.constant -2.000000e+00 : f32
      %159 = vector.broadcast %cst_72 : f32 to vector<8x1xf32>
      %160 = arith.cmpf oge, %151, %159 : vector<8x1xf32>
      %161 = arith.andi %155, %160 : vector<8x1xi1>
      %162 = arith.extui %153 : vector<8x1xi1> to vector<8x1xi32>
      %163 = arith.sitofp %162 : vector<8x1xi32> to vector<8x1xf32>
      %164 = arith.extui %158 : vector<8x1xi1> to vector<8x1xi32>
      %165 = arith.sitofp %164 : vector<8x1xi32> to vector<8x1xf32>
      %166 = arith.extui %155 : vector<8x1xi1> to vector<8x1xi32>
      %167 = arith.sitofp %166 : vector<8x1xi32> to vector<8x1xf32>
      %168 = arith.extui %161 : vector<8x1xi1> to vector<8x1xi32>
      %169 = arith.sitofp %168 : vector<8x1xi32> to vector<8x1xf32>
      %170 = vector.shape_cast %163 : vector<8x1xf32> to vector<1x8x1xf32>
      %cst_73 = arith.constant dense<0.000000e+00> : vector<1xf32>
      %171 = vector.multi_reduction <add>, %170, %cst_73 [1, 2] : vector<1x8x1xf32> to vector<1xf32>
      %172 = vector.shape_cast %171 : vector<1xf32> to vector<1x1x1xf32>
      %173 = vector.extract %172[0, 0, 0] : f32 from vector<1x1x1xf32>
      %174 = vector.shape_cast %165 : vector<8x1xf32> to vector<1x8x1xf32>
      %cst_74 = arith.constant dense<0.000000e+00> : vector<1xf32>
      %175 = vector.multi_reduction <add>, %174, %cst_74 [1, 2] : vector<1x8x1xf32> to vector<1xf32>
      %176 = vector.shape_cast %175 : vector<1xf32> to vector<1x1x1xf32>
      %177 = vector.extract %176[0, 0, 0] : f32 from vector<1x1x1xf32>
      %178 = vector.shape_cast %167 : vector<8x1xf32> to vector<1x8x1xf32>
      %cst_75 = arith.constant dense<0.000000e+00> : vector<1xf32>
      %179 = vector.multi_reduction <add>, %178, %cst_75 [1, 2] : vector<1x8x1xf32> to vector<1xf32>
      %180 = vector.shape_cast %179 : vector<1xf32> to vector<1x1x1xf32>
      %181 = vector.extract %180[0, 0, 0] : f32 from vector<1x1x1xf32>
      %182 = vector.shape_cast %169 : vector<8x1xf32> to vector<1x8x1xf32>
      %cst_76 = arith.constant dense<0.000000e+00> : vector<1xf32>
      %183 = vector.multi_reduction <add>, %182, %cst_76 [1, 2] : vector<1x8x1xf32> to vector<1xf32>
      %184 = vector.shape_cast %183 : vector<1xf32> to vector<1x1x1xf32>
      %185 = vector.extract %184[0, 0, 0] : f32 from vector<1x1x1xf32>
      %cst_77 = arith.constant 2.76310205 : f32
      %186 = vector.broadcast %cst_77 : f32 to vector<8x1xf32>
      %187 = arith.subf %90, %186 : vector<8x1xf32>
      %cst_78 = arith.constant 0.000000e+00 : f32
      %188 = vector.broadcast %cst_78 : f32 to vector<8x1xf32>
      %189 = arith.subf %188, %187 : vector<8x1xf32>
      %190 = math.exp %189 : vector<8x1xf32>
      %cst_79 = arith.constant 1.000000e+00 : f32
      %191 = vector.broadcast %cst_79 : f32 to vector<8x1xf32>
      %192 = arith.mulf %191, %190 : vector<8x1xf32>
      %193 = math.exp %147 : vector<8x1xf32>
      %cst_80 = arith.constant 1.000000e+00 : f32
      %194 = vector.broadcast %cst_80 : f32 to vector<8x1xf32>
      %195 = arith.mulf %194, %193 : vector<8x1xf32>
      %196 = arith.addf %192, %195 : vector<8x1xf32>
      %197 = arith.mulf %90, %196 : vector<8x1xf32>
      %198 = arith.mulf %197, %165 : vector<8x1xf32>
      %199 = vector.shape_cast %198 : vector<8x1xf32> to vector<1x8x1xf32>
      %cst_81 = arith.constant dense<0.000000e+00> : vector<1xf32>
      %200 = vector.multi_reduction <add>, %199, %cst_81 [1, 2] : vector<1x8x1xf32> to vector<1xf32>
      %201 = vector.shape_cast %200 : vector<1xf32> to vector<1x1x1xf32>
      %202 = vector.extract %201[0, 0, 0] : f32 from vector<1x1x1xf32>
      %cst_82 = arith.constant 1.000000e+00 : f32
      %203 = arith.maximumf %177, %cst_82 : f32
      %204 = arith.divf %202, %203 : f32
      %205 = vector.broadcast %165 : vector<8x1xf32> to vector<8x128xf32>
      %206 = arith.mulf %80, %205 : vector<8x128xf32>
      %cst_83 = arith.constant dense<0.000000e+00> : vector<128xf32>
      %207 = vector.multi_reduction <add>, %206, %cst_83 [0] : vector<8x128xf32> to vector<128xf32>
      %208 = vector.shape_cast %207 : vector<128xf32> to vector<1x128xf32>
      %cst_84 = arith.constant 1.000000e+00 : f32
      %209 = arith.maximumf %177, %cst_84 : f32
      %210 = vector.broadcast %209 : f32 to vector<1x128xf32>
      %211 = arith.divf %208, %210 : vector<1x128xf32>
      %212 = vector.broadcast %169 : vector<8x1xf32> to vector<8x128xf32>
      %213 = arith.mulf %80, %212 : vector<8x128xf32>
      %cst_85 = arith.constant dense<0.000000e+00> : vector<128xf32>
      %214 = vector.multi_reduction <add>, %213, %cst_85 [0] : vector<8x128xf32> to vector<128xf32>
      %215 = vector.shape_cast %214 : vector<128xf32> to vector<1x128xf32>
      %cst_86 = arith.constant 1.000000e+00 : f32
      %216 = arith.maximumf %185, %cst_86 : f32
      %217 = vector.broadcast %216 : f32 to vector<1x128xf32>
      %218 = arith.divf %215, %217 : vector<1x128xf32>
      %c0_87 = arith.constant 0 : index
      %c0_88 = arith.constant 0 : index
      %219 = vector.load %arg10[%c0_87, %c0_88] : memref<8x128xf32, #tpu.memory_space<vmem>>, vector<8x128xf32>
      tpu.vector_store %arg10[%c0_87, %c0_88], %42 {strides = array<i32>} : memref<8x128xf32, #tpu.memory_space<vmem>>, vector<8x128xf32>,
      %220 = tpu.iota {dimensions = array<i32: 0>} : vector<8x128xi32>
      %221 = tpu.iota {dimensions = array<i32: 1>} : vector<8x128xi32>
      %c0_i32_89 = arith.constant 0 : i32
      %222 = vector.broadcast %c0_i32_89 : i32 to vector<8x128xi32>
      %223 = arith.cmpi eq, %221, %222 : vector<8x128xi32>
      %cst_90 = arith.constant 0.000000e+00 : f32
      %224 = vector.broadcast %173 : f32 to vector<8x128xf32>
      %225 = vector.broadcast %cst_90 : f32 to vector<8x128xf32>
      %226 = arith.select %223, %224, %225 : vector<8x128xi1>, vector<8x128xf32>
      %c1_i32 = arith.constant 1 : i32
      %227 = vector.broadcast %c1_i32 : i32 to vector<8x128xi32>
      %228 = arith.cmpi eq, %221, %227 : vector<8x128xi32>
      %cst_91 = arith.constant 0.000000e+00 : f32
      %229 = vector.broadcast %177 : f32 to vector<8x128xf32>
      %230 = vector.broadcast %cst_91 : f32 to vector<8x128xf32>
      %231 = arith.select %228, %229, %230 : vector<8x128xi1>, vector<8x128xf32>
      %232 = arith.addf %226, %231 : vector<8x128xf32>
      %c2_i32 = arith.constant 2 : i32
      %233 = vector.broadcast %c2_i32 : i32 to vector<8x128xi32>
      %234 = arith.cmpi eq, %221, %233 : vector<8x128xi32>
      %cst_92 = arith.constant 0.000000e+00 : f32
      %235 = vector.broadcast %181 : f32 to vector<8x128xf32>
      %236 = vector.broadcast %cst_92 : f32 to vector<8x128xf32>
      %237 = arith.select %234, %235, %236 : vector<8x128xi1>, vector<8x128xf32>
      %238 = arith.addf %232, %237 : vector<8x128xf32>
      %c3_i32_93 = arith.constant 3 : i32
      %239 = vector.broadcast %c3_i32_93 : i32 to vector<8x128xi32>
      %240 = arith.cmpi eq, %221, %239 : vector<8x128xi32>
      %cst_94 = arith.constant 0.000000e+00 : f32
      %241 = vector.broadcast %185 : f32 to vector<8x128xf32>
      %242 = vector.broadcast %cst_94 : f32 to vector<8x128xf32>
      %243 = arith.select %240, %241, %242 : vector<8x128xi1>, vector<8x128xf32>
      %244 = arith.addf %238, %243 : vector<8x128xf32>
      %c4_i32 = arith.constant 4 : i32
      %245 = vector.broadcast %c4_i32 : i32 to vector<8x128xi32>
      %246 = arith.cmpi eq, %221, %245 : vector<8x128xi32>
      %cst_95 = arith.constant 0.000000e+00 : f32
      %247 = vector.broadcast %204 : f32 to vector<8x128xf32>
      %248 = vector.broadcast %cst_95 : f32 to vector<8x128xf32>
      %249 = arith.select %246, %247, %248 : vector<8x128xi1>, vector<8x128xf32>
      %250 = arith.addf %244, %249 : vector<8x128xf32>
      %c0_i32_96 = arith.constant 0 : i32
      %251 = vector.broadcast %c0_i32_96 : i32 to vector<8x128xi32>
      %252 = arith.cmpi eq, %220, %251 : vector<8x128xi32>
      %cst_97 = arith.constant 0.000000e+00 : f32
      %253 = vector.shape_cast %211 : vector<1x128xf32> to vector<1x128xf32>
      %254 = vector.broadcast %253 : vector<1x128xf32> to vector<8x128xf32>
      %255 = vector.broadcast %cst_97 : f32 to vector<8x128xf32>
      %256 = arith.select %252, %254, %255 : vector<8x128xi1>, vector<8x128xf32>
      %c1_i32_98 = arith.constant 1 : i32
      %257 = vector.broadcast %c1_i32_98 : i32 to vector<8x128xi32>
      %258 = arith.cmpi eq, %220, %257 : vector<8x128xi32>
      %cst_99 = arith.constant 0.000000e+00 : f32
      %259 = vector.shape_cast %218 : vector<1x128xf32> to vector<1x128xf32>
      %260 = vector.broadcast %259 : vector<1x128xf32> to vector<8x128xf32>
      %261 = vector.broadcast %cst_99 : f32 to vector<8x128xf32>
      %262 = arith.select %258, %260, %261 : vector<8x128xi1>, vector<8x128xf32>
      %263 = arith.addf %256, %262 : vector<8x128xf32>
      %c2_i32_100 = arith.constant 2 : i32
      %264 = vector.broadcast %c2_i32_100 : i32 to vector<8x128xi32>
      %265 = arith.cmpi eq, %220, %264 : vector<8x128xi32>
      %cst_101 = arith.constant 0.000000e+00 : f32
      %266 = vector.broadcast %cst_101 : f32 to vector<8x128xf32>
      %267 = arith.select %265, %250, %266 : vector<8x128xi1>, vector<8x128xf32>
      %268 = arith.addf %263, %267 : vector<8x128xf32>
      %c0_102 = arith.constant 0 : index
      %c0_103 = arith.constant 0 : index
      %269 = vector.load %arg11[%c0_102, %c0_103] : memref<8x128xf32, #tpu.memory_space<vmem>>, vector<8x128xf32>
      tpu.vector_store %arg11[%c0_102, %c0_103], %268 {strides = array<i32>} : memref<8x128xf32, #tpu.memory_space<vmem>>, vector<8x128xf32>,
    } else {
    }
    return
  }
  func.func @transform_0(%arg0: i32) -> (i32, i32) {
    %c0_i32 = arith.constant 0 : i32
    %c0_i32_0 = arith.constant 0 : i32
    return %c0_i32, %arg0 : i32, i32
  }
  func.func @transform_1(%arg0: i32) -> (i32, i32) {
    %c0_i32 = arith.constant 0 : i32
    %c0_i32_0 = arith.constant 0 : i32
    return %c0_i32, %arg0 : i32, i32
  }
  func.func @transform_2(%arg0: i32) -> (i32, i32) {
    %c0_i32 = arith.constant 0 : i32
    %c0_i32_0 = arith.constant 0 : i32
    return %arg0, %c0_i32 : i32, i32
  }
  func.func @transform_3(%arg0: i32) -> (i32, i32) {
    %c0_i32 = arith.constant 0 : i32
    %c0_i32_0 = arith.constant 0 : i32
    return %arg0, %c0_i32 : i32, i32
  }
  func.func @transform_4(%arg0: i32) -> (i32, i32) {
    %c0_i32 = arith.constant 0 : i32
    %c0_i32_0 = arith.constant 0 : i32
    %c0_i32_1 = arith.constant 0 : i32
    return %c0_i32, %c0_i32_0 : i32, i32
  }
  func.func @transform_5(%arg0: i32) -> (i32, i32) {
    %c0_i32 = arith.constant 0 : i32
    %c0_i32_0 = arith.constant 0 : i32
    %c0_i32_1 = arith.constant 0 : i32
    return %c0_i32, %c0_i32_0 : i32, i32
  }
  func.func @transform_6(%arg0: i32) -> (i32, i32) {
    %c0_i32 = arith.constant 0 : i32
    %c0_i32_0 = arith.constant 0 : i32
    %c0_i32_1 = arith.constant 0 : i32
    return %c0_i32, %c0_i32_0 : i32, i32
  }
  func.func @transform_7(%arg0: i32) -> (i32, i32) {
    %c0_i32 = arith.constant 0 : i32
    %c0_i32_0 = arith.constant 0 : i32
    %c0_i32_1 = arith.constant 0 : i32
    return %c0_i32, %c0_i32_0 : i32, i32
  }
  func.func @transform_8(%arg0: i32) -> (i32, i32) {
    %c0_i32 = arith.constant 0 : i32
    %c0_i32_0 = arith.constant 0 : i32
    %c0_i32_1 = arith.constant 0 : i32
    return %c0_i32, %c0_i32_0 : i32, i32
  }
  func.func @transform_9(%arg0: i32) -> (i32, i32) {
    %c0_i32 = arith.constant 0 : i32
    %c0_i32_0 = arith.constant 0 : i32
    %c0_i32_1 = arith.constant 0 : i32
    return %c0_i32, %c0_i32_0 : i32, i32
  }
  func.func @transform_10(%arg0: i32) -> (i32, i32) {
    %c0_i32 = arith.constant 0 : i32
    %c0_i32_0 = arith.constant 0 : i32
    %c0_i32_1 = arith.constant 0 : i32
    return %c0_i32, %c0_i32_0 : i32, i32
  }
}

</mosaic_0001>

<llo_original>
// kernel: _device_forward.1
$region0: #{_device_forward.1}
  #allocation0 [shape = 'u32[]', space=smem, size = 0x4, offset = 0x4, fixed_abs, tag = 'smem constant byte address 0x4 - core index']
  #allocation1 [shape = 'u32[72,128]{1,0:T(1,128)}', space=vmem, size = 0x9000, scoped, tag = 'internal scratch']
  #allocation2 [shape = 'f32[8,128]{1,0:T(8,128)}', space=vmem, size = 0x1000, scoped, tag = 'scratch operand']
  #allocation3 [shape = 'f32[8,128]{1,0:T(8,128)}', space=vmem, size = 0x1000, scoped, tag = 'scratch operand']
  #allocation4 [shape = 'f32[8,8]{1,0:T(8,128)}', space=vmem, size = 0x1000, scoped, tag = 'scratch operand']
  %s0 = inlined_call_operand.vmem [shape: bf16[8,1024], index: 0, kind: input, shape index: {}]
  %s1 = inlined_call_operand.vmem [shape: bf16[1,1024], index: 1, kind: input, shape index: {}]
  %s2 = inlined_call_operand.vmem [shape: bf16[1024,8], index: 2, kind: input, shape index: {}]
  %s3 = inlined_call_operand.vmem [shape: bf16[1024,128], index: 3, kind: input, shape index: {}]
  %s4 = inlined_call_operand.vmem [shape: f32[1,128], index: 4, kind: input, shape index: {}]
  %s5 = inlined_call_operand.vmem [shape: bf16[128,256], index: 5, kind: input, shape index: {}]
  %s6 = inlined_call_operand.vmem [shape: f32[1,256], index: 6, kind: input, shape index: {}]
  %s7 = inlined_call_operand.vmem [shape: bf16[8,128], index: 7, kind: input, shape index: {}]
  %s8 = inlined_call_operand.vmem [shape: f32[1,128], index: 8, kind: input, shape index: {}]
  %s9 = inlined_call_operand.hbm [shape: f32[8,128], index: 9, kind: output, shape index: {0}]
  %s10 = inlined_call_operand.hbm [shape: f32[8,128], index: 10, kind: output, shape index: {1}]
  %11 = xla_tuple %s9, %s10
  %s12 = sld [smem:[#allocation0]]
  $region85: #{_device_forward.1} parent=0
    _
  %s14 = ssub.s32 1, %s12
  %s15 = scalar_select 0, %s14, %s12
  $region1: #{_device_forward.1} parent=0
    #allocation5 [shape = 'u8[4096]{0}', space=vmem, size = 0x1000, scoped, tag = 'output window, operand 0, single buffered']
    #allocation6 [shape = 's32[2]{0}', space=sflag, size = 0x8, scoped, tag = 'scoped memory for _device_forward.1']
    #allocation7 [shape = 'u8[4096]{0}', space=vmem, size = 0x1000, scoped, tag = 'output window, operand 1, single buffered']
    #allocation8 [shape = 's32[1]{0}', space=sflag, size = 0x4, scoped, tag = 'scoped memory for _device_forward.1']
    %16 = vsyncpa [#allocation6], 0
    %17 = vsyncpa [#allocation8], 0
    loop: start=0, step=1, limit=6
    $region2: #{_device_forward.1} parent=1 // loop_pre_header
      _
    $region3: #{_device_forward.1} parent=1 // loop_header
      %s19 = sphi 0, %s23
      %p20 = scmp.ge.s32.totalorder %s19, 6
      %s29 = sphi 0, %s31
      %s32 = sphi 0, %s29
      %s33 = sphi 0, %s32
      %s49 = sphi 0, %s33
      %s55 = sphi 0, %s57
      %s58 = sphi 0, %s55
      %s59 = sphi 0, %s58
      %s75 = sphi 0, %s59
      %s81 = sphi 0, %s83
      %s84 = sphi 0, %s81
      %s85 = sphi 0, %s84
      %s101 = sphi 0, %s85
      %s107 = sphi 0, %s109
      %s110 = sphi 0, %s107
      %s111 = sphi 0, %s110
      %s127 = sphi 0, %s111
      %s131 = sphi 0, %s131
      %s133 = sphi 0, %s131
      %s134 = sphi 0, %s133
      %s148 = sphi 0, %s134
      %s152 = sphi 0, %s152
      %s154 = sphi 0, %s152
      %s155 = sphi 0, %s154
      %s169 = sphi 0, %s155
      %s173 = sphi 0, %s173
      %s175 = sphi 0, %s173
      %s176 = sphi 0, %s175
      %s190 = sphi 0, %s176
      %s194 = sphi 0, %s194
      %s196 = sphi 0, %s194
      %s197 = sphi 0, %s196
      %s211 = sphi 0, %s197
      %s215 = sphi 0, %s215
      %s217 = sphi 0, %s215
      %s218 = sphi 0, %s217
      %s232 = sphi 0, %s218
      %s236 = sphi 0, %s236
      %s238 = sphi 0, %s236
      %s239 = sphi 0, %s238
      %s253 = sphi 0, %s239
      %s257 = sphi 0, %s257
      %s259 = sphi 0, %s257
      %s260 = sphi 0, %s259
      %s274 = sphi 0, %s260
    $region4: #{_device_forward.1} parent=1 // loop_header_branch
      %22 = sbr.rel (%p20) target = $region8
    $region5: #{_device_forward.1} parent=1 // loop_body
      %s24 = ssub.s32 %s19, 1
      %s25 = ssub.s32 %s19, 2
      %s26 = sadd.s32 %s19, 1
      %s27 = ssub.s32 %s19, %s26
      %p28 = scmp.eq.s32.totalorder %s27, 0
      %s30 = sadd.s32 %s29, 1
      %s31 = scalar_select %p28, %s29, %s30
      %p34 = pneg %p28
      %p35 = scmp.eq.s32.totalorder %s19, 3
      %p36 = por %p34, %p35
      %p37 = scmp.ne.s32.totalorder %s29, %s32
      %p38 = scmp.eq.s32.totalorder %s19, 0
      %p39 = por %p37, %p38
      %p40 = scmp.ne.s32.totalorder %s29, %s32
      %p41 = scmp.eq.s32.totalorder %s24, 3
      %p42 = por %p40, %p41
      %p43 = scmp.ne.s32.totalorder %s32, %s33
      %p44 = scmp.eq.s32.totalorder %s24, 0
      %p45 = por %p43, %p44
      %p46 = scmp.ne.s32.totalorder %s32, %s33
      %p47 = scmp.eq.s32.totalorder %s25, 3
      %p48 = por %p46, %p47
      %p50 = scmp.ne.s32.totalorder %s33, %s49
      %p51 = scmp.eq.s32.totalorder %s25, 0
      %p52 = por %p50, %p51
      %s53 = ssub.s32 %s19, %s26
      %p54 = scmp.eq.s32.totalorder %s53, 0
      %s56 = sadd.s32 %s55, 1
      %s57 = scalar_select %p54, %s55, %s56
      %p60 = pneg %p54
      %p61 = scmp.eq.s32.totalorder %s19, 3
      %p62 = por %p60, %p61
      %p63 = scmp.ne.s32.totalorder %s55, %s58
      %p64 = scmp.eq.s32.totalorder %s19, 0
      %p65 = por %p63, %p64
      %p66 = scmp.ne.s32.totalorder %s55, %s58
      %p67 = scmp.eq.s32.totalorder %s24, 3
      %p68 = por %p66, %p67
      %p69 = scmp.ne.s32.totalorder %s58, %s59
      %p70 = scmp.eq.s32.totalorder %s24, 0
      %p71 = por %p69, %p70
      %p72 = scmp.ne.s32.totalorder %s58, %s59
      %p73 = scmp.eq.s32.totalorder %s25, 3
      %p74 = por %p72, %p73
      %p76 = scmp.ne.s32.totalorder %s59, %s75
      %p77 = scmp.eq.s32.totalorder %s25, 0
      %p78 = por %p76, %p77
      %s79 = ssub.s32 %s19, %s26
      %p80 = scmp.eq.s32.totalorder %s79, 0
      %s82 = sadd.s32 %s81, 1
      %s83 = scalar_select %p80, %s81, %s82
      %p86 = pneg %p80
      %p87 = scmp.eq.s32.totalorder %s19, 3
      %p88 = por %p86, %p87
      %p89 = scmp.ne.s32.totalorder %s81, %s84
      %p90 = scmp.eq.s32.totalorder %s19, 0
      %p91 = por %p89, %p90
      %p92 = scmp.ne.s32.totalorder %s81, %s84
      %p93 = scmp.eq.s32.totalorder %s24, 3
      %p94 = por %p92, %p93
      %p95 = scmp.ne.s32.totalorder %s84, %s85
      %p96 = scmp.eq.s32.totalorder %s24, 0
      %p97 = por %p95, %p96
      %p98 = scmp.ne.s32.totalorder %s84, %s85
      %p99 = scmp.eq.s32.totalorder %s25, 3
      %p100 = por %p98, %p99
      %p102 = scmp.ne.s32.totalorder %s85, %s101
      %p103 = scmp.eq.s32.totalorder %s25, 0
      %p104 = por %p102, %p103
      %s105 = ssub.s32 %s19, %s26
      %p106 = scmp.eq.s32.totalorder %s105, 0
      %s108 = sadd.s32 %s107, 1
      %s109 = scalar_select %p106, %s107, %s108
      %p112 = pneg %p106
      %p113 = scmp.eq.s32.totalorder %s19, 3
      %p114 = por %p112, %p113
      %p115 = scmp.ne.s32.totalorder %s107, %s110
      %p116 = scmp.eq.s32.totalorder %s19, 0
      %p117 = por %p115, %p116
      %p118 = scmp.ne.s32.totalorder %s107, %s110
      %p119 = scmp.eq.s32.totalorder %s24, 3
      %p120 = por %p118, %p119
      %p121 = scmp.ne.s32.totalorder %s110, %s111
      %p122 = scmp.eq.s32.totalorder %s24, 0
      %p123 = por %p121, %p122
      %p124 = scmp.ne.s32.totalorder %s110, %s111
      %p125 = scmp.eq.s32.totalorder %s25, 3
      %p126 = por %p124, %p125
      %p128 = scmp.ne.s32.totalorder %s111, %s127
      %p129 = scmp.eq.s32.totalorder %s25, 0
      %p130 = por %p128, %p129
      %s132 = sadd.s32 %s131, 1
      %p135 = scmp.eq.s32.totalorder %s19, 3
      %p136 = scmp.ne.s32.totalorder %s131, %s133
      %p137 = scmp.eq.s32.totalorder %s19, 0
      %p138 = por %p136, %p137
      %p139 = scmp.ne.s32.totalorder %s131, %s133
      %p140 = scmp.eq.s32.totalorder %s24, 3
      %p141 = por %p139, %p140
      %p142 = scmp.ne.s32.totalorder %s133, %s134
      %p143 = scmp.eq.s32.totalorder %s24, 0
      %p144 = por %p142, %p143
      %p145 = scmp.ne.s32.totalorder %s133, %s134
      %p146 = scmp.eq.s32.totalorder %s25, 3
      %p147 = por %p145, %p146
      %p149 = scmp.ne.s32.totalorder %s134, %s148
      %p150 = scmp.eq.s32.totalorder %s25, 0
      %p151 = por %p149, %p150
      %s153 = sadd.s32 %s152, 1
      %p156 = scmp.eq.s32.totalorder %s19, 3
      %p157 = scmp.ne.s32.totalorder %s152, %s154
      %p158 = scmp.eq.s32.totalorder %s19, 0
      %p159 = por %p157, %p158
      %p160 = scmp.ne.s32.totalorder %s152, %s154
      %p161 = scmp.eq.s32.totalorder %s24, 3
      %p162 = por %p160, %p161
      %p163 = scmp.ne.s32.totalorder %s154, %s155
      %p164 = scmp.eq.s32.totalorder %s24, 0
      %p165 = por %p163, %p164
      %p166 = scmp.ne.s32.totalorder %s154, %s155
      %p167 = scmp.eq.s32.totalorder %s25, 3
      %p168 = por %p166, %p167
      %p170 = scmp.ne.s32.totalorder %s155, %s169
      %p171 = scmp.eq.s32.totalorder %s25, 0
      %p172 = por %p170, %p171
      %s174 = sadd.s32 %s173, 1
      %p177 = scmp.eq.s32.totalorder %s19, 3
      %p178 = scmp.ne.s32.totalorder %s173, %s175
      %p179 = scmp.eq.s32.totalorder %s19, 0
      %p180 = por %p178, %p179
      %p181 = scmp.ne.s32.totalorder %s173, %s175
      %p182 = scmp.eq.s32.totalorder %s24, 3
      %p183 = por %p181, %p182
      %p184 = scmp.ne.s32.totalorder %s175, %s176
      %p185 = scmp.eq.s32.totalorder %s24, 0
      %p186 = por %p184, %p185
      %p187 = scmp.ne.s32.totalorder %s175, %s176
      %p188 = scmp.eq.s32.totalorder %s25, 3
      %p189 = por %p187, %p188
      %p191 = scmp.ne.s32.totalorder %s176, %s190
      %p192 = scmp.eq.s32.totalorder %s25, 0
      %p193 = por %p191, %p192
      %s195 = sadd.s32 %s194, 1
      %p198 = scmp.eq.s32.totalorder %s19, 3
      %p199 = scmp.ne.s32.totalorder %s194, %s196
      %p200 = scmp.eq.s32.totalorder %s19, 0
      %p201 = por %p199, %p200
      %p202 = scmp.ne.s32.totalorder %s194, %s196
      %p203 = scmp.eq.s32.totalorder %s24, 3
      %p204 = por %p202, %p203
      %p205 = scmp.ne.s32.totalorder %s196, %s197
      %p206 = scmp.eq.s32.totalorder %s24, 0
      %p207 = por %p205, %p206
      %p208 = scmp.ne.s32.totalorder %s196, %s197
      %p209 = scmp.eq.s32.totalorder %s25, 3
      %p210 = por %p208, %p209
      %p212 = scmp.ne.s32.totalorder %s197, %s211
      %p213 = scmp.eq.s32.totalorder %s25, 0
      %p214 = por %p212, %p213
      %s216 = sadd.s32 %s215, 1
      %p219 = scmp.eq.s32.totalorder %s19, 3
      %p220 = scmp.ne.s32.totalorder %s215, %s217
      %p221 = scmp.eq.s32.totalorder %s19, 0
      %p222 = por %p220, %p221
      %p223 = scmp.ne.s32.totalorder %s215, %s217
      %p224 = scmp.eq.s32.totalorder %s24, 3
      %p225 = por %p223, %p224
      %p226 = scmp.ne.s32.totalorder %s217, %s218
      %p227 = scmp.eq.s32.totalorder %s24, 0
      %p228 = por %p226, %p227
      %p229 = scmp.ne.s32.totalorder %s217, %s218
      %p230 = scmp.eq.s32.totalorder %s25, 3
      %p231 = por %p229, %p230
      %p233 = scmp.ne.s32.totalorder %s218, %s232
      %p234 = scmp.eq.s32.totalorder %s25, 0
      %p235 = por %p233, %p234
      %s237 = sadd.s32 %s236, 1
      %p240 = scmp.eq.s32.totalorder %s19, 3
      %p241 = scmp.ne.s32.totalorder %s236, %s238
      %p242 = scmp.eq.s32.totalorder %s19, 0
      %p243 = por %p241, %p242
      %p244 = scmp.ne.s32.totalorder %s236, %s238
      %p245 = scmp.eq.s32.totalorder %s24, 3
      %p246 = por %p244, %p245
      %p247 = scmp.ne.s32.totalorder %s238, %s239
      %p248 = scmp.eq.s32.totalorder %s24, 0
      %p249 = por %p247, %p248
      %p250 = scmp.ne.s32.totalorder %s238, %s239
      %p251 = scmp.eq.s32.totalorder %s25, 3
      %p252 = por %p250, %p251
      %p254 = scmp.ne.s32.totalorder %s239, %s253
      %p255 = scmp.eq.s32.totalorder %s25, 0
      %p256 = por %p254, %p255
      %s258 = sadd.s32 %s257, 1
      %p261 = scmp.eq.s32.totalorder %s19, 3
      %p262 = scmp.ne.s32.totalorder %s257, %s259
      %p263 = scmp.eq.s32.totalorder %s19, 0
      %p264 = por %p262, %p263
      %p265 = scmp.ne.s32.totalorder %s257, %s259
      %p266 = scmp.eq.s32.totalorder %s24, 3
      %p267 = por %p265, %p266
      %p268 = scmp.ne.s32.totalorder %s259, %s260
      %p269 = scmp.eq.s32.totalorder %s24, 0
      %p270 = por %p268, %p269
      %p271 = scmp.ne.s32.totalorder %s259, %s260
      %p272 = scmp.eq.s32.totalorder %s25, 3
      %p273 = por %p271, %p272
      %p275 = scmp.ne.s32.totalorder %s260, %s274
      %p276 = scmp.eq.s32.totalorder %s25, 0
      %p277 = por %p275, %p276
      %p278 = scmp.le.s32.totalorder 1, %s19
      %p279 = scmp.lt.s32.totalorder %s19, 5
      %p280 = pnand %p278, %p279
      %p281 = pneg %p280
      // Predicated region
      $region9: #{_device_forward.1} parent=5 // pred_check
        _
      $region10: #{_device_forward.1} parent=5 // pred_check_branch
        %283 = sbr.rel (%p280) target = $region12
      $region11: #{_device_forward.1} parent=5 // pred_region
        %s284 = ssub.s32 %s19, 1
        // Predicated region
        $region13: #{_device_forward.1} parent=11 // pred_check
          %p285 = pneg %p144
        $region14: #{_device_forward.1} parent=11 // pred_check_branch
          %287 = sbr.rel (%p285) target = $region16
        $region15: #{_device_forward.1} parent=11 // pred_region
          _
        $region16: #{_device_forward.1} parent=11 // pred_fallthru
          _
        // Predicated region
        $region17: #{_device_forward.1} parent=11 // pred_check
          %p288 = pneg %p165
        $region18: #{_device_forward.1} parent=11 // pred_check_branch
          %290 = sbr.rel (%p288) target = $region20
        $region19: #{_device_forward.1} parent=11 // pred_region
          _
        $region20: #{_device_forward.1} parent=11 // pred_fallthru
          _
        // Predicated region
        $region21: #{_device_forward.1} parent=11 // pred_check
          %p291 = pneg %p186
        $region22: #{_device_forward.1} parent=11 // pred_check_branch
          %293 = sbr.rel (%p291) target = $region24
        $region23: #{_device_forward.1} parent=11 // pred_region
          _
        $region24: #{_device_forward.1} parent=11 // pred_fallthru
          _
        // Predicated region
        $region25: #{_device_forward.1} parent=11 // pred_check
          %p294 = pneg %p207
        $region26: #{_device_forward.1} parent=11 // pred_check_branch
          %296 = sbr.rel (%p294) target = $region28
        $region27: #{_device_forward.1} parent=11 // pred_region
          _
        $region28: #{_device_forward.1} parent=11 // pred_fallthru
          _
        // Predicated region
        $region29: #{_device_forward.1} parent=11 // pred_check
          %p297 = pneg %p228
        $region30: #{_device_forward.1} parent=11 // pred_check_branch
          %299 = sbr.rel (%p297) target = $region32
        $region31: #{_device_forward.1} parent=11 // pred_region
          _
        $region32: #{_device_forward.1} parent=11 // pred_fallthru
          _
      $region12: #{_device_forward.1} parent=5 // pred_fallthru
        _
      %p300 = scmp.lt.s32.totalorder %s19, 4
      // Predicated region
      $region33: #{_device_forward.1} parent=5 // pred_check
        %p301 = pneg %p300
      $region34: #{_device_forward.1} parent=5 // pred_check_branch
        %303 = sbr.rel (%p301) target = $region36
      $region35: #{_device_forward.1} parent=5 // pred_region
        // Predicated region
        $region37: #{_device_forward.1} parent=35 // pred_check
          %p304 = pneg %p39
        $region38: #{_device_forward.1} parent=35 // pred_check_branch
          %306 = sbr.rel (%p304) target = $region40
        $region39: #{_device_forward.1} parent=35 // pred_region
          %s307 = smul.u32 2, %s19
          %p308 = scmp.lt.s32.totalorder %s307, 7
          %s309 = scalar_select %p308, %s307, 7
          %s310 = smul.addr %s309, 4
          %s311 = scalar_lea.vmem %s0, %s310
          %s312 = smul.u32 2, %s19
        $region40: #{_device_forward.1} parent=35 // pred_fallthru
          _
        // Predicated region
        $region41: #{_device_forward.1} parent=35 // pred_check
          %p313 = pneg %p65
        $region42: #{_device_forward.1} parent=35 // pred_check_branch
          %315 = sbr.rel (%p313) target = $region44
        $region43: #{_device_forward.1} parent=35 // pred_region
          %s316 = smul.u32 2, %s19
          %p317 = scmp.lt.s32.totalorder %s316, 7
          %s318 = scalar_select %p317, %s316, 7
          %s319 = scalar_lea.vmem %s1, %s318
          %s320 = smul.u32 2, %s19
        $region44: #{_device_forward.1} parent=35 // pred_fallthru
          _
        // Predicated region
        $region45: #{_device_forward.1} parent=35 // pred_check
          %p321 = pneg %p91
        $region46: #{_device_forward.1} parent=35 // pred_check_branch
          %323 = sbr.rel (%p321) target = $region48
        $region47: #{_device_forward.1} parent=35 // pred_region
          %s324 = smul.u32 32, %s19
          %p325 = scmp.lt.s32.totalorder %s324, 127
          %s326 = scalar_select %p325, %s324, 127
          %s327 = smul.addr %s326, 4
          %s328 = scalar_lea.vmem %s2, %s327
          %s329 = smul.u32 32, %s19
        $region48: #{_device_forward.1} parent=35 // pred_fallthru
          _
        // Predicated region
        $region49: #{_device_forward.1} parent=35 // pred_check
          %p330 = pneg %p117
        $region50: #{_device_forward.1} parent=35 // pred_check_branch
          %332 = sbr.rel (%p330) target = $region52
        $region51: #{_device_forward.1} parent=35 // pred_region
          %s333 = smul.u32 32, %s19
          %p334 = scmp.lt.s32.totalorder %s333, 127
          %s335 = scalar_select %p334, %s333, 127
          %s336 = smul.addr %s335, 4
          %s337 = scalar_lea.vmem %s3, %s336
          %s338 = smul.u32 32, %s19
        $region52: #{_device_forward.1} parent=35 // pred_fallthru
          _
      $region36: #{_device_forward.1} parent=5 // pred_fallthru
        _
      %p339 = scmp.le.s32.totalorder 1, %s19
      %p340 = scmp.lt.s32.totalorder %s19, 5
      %p341 = pnand %p339, %p340
      %p342 = pneg %p341
      // Predicated region
      $region53: #{_device_forward.1} parent=5 // pred_check
        _
      $region54: #{_device_forward.1} parent=5 // pred_check_branch
        %344 = sbr.rel (%p341) target = $region56
      $region55: #{_device_forward.1} parent=5 // pred_region
        %s345 = ssub.s32 %s19, 1
        %s346 = smul.u32 2, %s24
        %p347 = scmp.lt.s32.totalorder %s346, 7
        %s348 = scalar_select %p347, %s346, 7
        %s349 = smul.addr %s348, 4
        %s350 = scalar_lea.vmem %s0, %s349
        %p351 = pneg %p45
        %p352 = pneg %p42
        %s353 = smul.u32 2, %s24
        %p354 = scmp.lt.s32.totalorder %s353, 7
        %s355 = scalar_select %p354, %s353, 7
        %s356 = scalar_lea.vmem %s1, %s355
        %p357 = pneg %p71
        %p358 = pneg %p68
        %s359 = smul.u32 32, %s24
        %p360 = scmp.lt.s32.totalorder %s359, 127
        %s361 = scalar_select %p360, %s359, 127
        %s362 = smul.addr %s361, 4
        %s363 = scalar_lea.vmem %s2, %s362
        %p364 = pneg %p97
        %p365 = pneg %p94
        %s366 = smul.u32 32, %s24
        %p367 = scmp.lt.s32.totalorder %s366, 127
        %s368 = scalar_select %p367, %s366, 127
        %s369 = smul.addr %s368, 4
        %s370 = scalar_lea.vmem %s3, %s369
        %p371 = pneg %p123
        %p372 = pneg %p120
        %p373 = pneg %p144
        %p374 = pneg %p141
        %p375 = pneg %p165
        %p376 = pneg %p162
        %p377 = pneg %p186
        %p378 = pneg %p183
        %p379 = pneg %p207
        %p380 = pneg %p204
        %p381 = pneg %p228
        %p382 = pneg %p225
        %p383 = pneg %p249
        %p384 = pneg %p246
        %p385 = pneg %p270
        %p386 = pneg %p267
        %s387 = smul.u32 2, %s24
        %p388 = scmp.lt.s32.totalorder %s387, 7
        %s389 = scalar_select %p388, %s387, 7
        %s390 = smul.addr %s389, 4
        %s391 = scalar_lea.vmem %s0, %s390
        %s392 = smul.u32 2, %s24
        %s393 = smul.u32 2, %s24
        %p394 = scmp.lt.s32.totalorder %s393, 7
        %s395 = scalar_select %p394, %s393, 7
        %s396 = scalar_lea.vmem %s1, %s395
        %s397 = smul.u32 2, %s24
        %s398 = smul.u32 32, %s24
        %p399 = scmp.lt.s32.totalorder %s398, 127
        %s400 = scalar_select %p399, %s398, 127
        %s401 = smul.addr %s400, 4
        %s402 = scalar_lea.vmem %s2, %s401
        %s403 = smul.u32 32, %s24
        %s404 = smul.u32 32, %s24
        %p405 = scmp.lt.s32.totalorder %s404, 127
        %s406 = scalar_select %p405, %s404, 127
        %s407 = smul.addr %s406, 4
        %s408 = scalar_lea.vmem %s3, %s407
        %s409 = smul.u32 32, %s24
        %p411 = scmp.eq.s32.totalorder %s24, 0
        // Predicated region
        $region57: #{_device_forward.1} parent=55 // pred_check
          %p412 = pneg %p411
        $region58: #{_device_forward.1} parent=55 // pred_check_branch
          %414 = sbr.rel (%p412) target = $region60
        $region59: #{_device_forward.1} parent=55 // pred_region
          %415 = vst [vmem:[#allocation2] sm:$0xff] 0.0
          %416 = vst [vmem:[#allocation3] sm:$0xff] 0.0
          %vm417 = vcmask 64512
          %418 = vst.msk [vmem:[#allocation4] sm:$0xff] %vm417, 0.0
        $region60: #{_device_forward.1} parent=55 // pred_fallthru
          _
        %v419 = vld [vmem:[%s391] sm:$0xff]
        %v420 = vld [vmem:[%s408] sm:$0xf]
        %v421 = vld [vmem:[%s408 + $0x4] sm:$0xf]
        %v422 = vld [vmem:[%s408 + $0x8] sm:$0xf]
        %v423 = vld [vmem:[%s408 + $0xc] sm:$0xf]
        %v424 = vld [vmem:[%s408 + $0x10] sm:$0xf]
        %v425 = vld [vmem:[%s408 + $0x14] sm:$0xf]
        %v426 = vld [vmem:[%s408 + $0x18] sm:$0xf]
        %v427 = vld [vmem:[%s408 + $0x1c] sm:$0xf]
        %v428 = vld [vmem:[%s408 + $0x20] sm:$0xf]
        %v429 = vld [vmem:[%s408 + $0x24] sm:$0xf]
        %v430 = vld [vmem:[%s408 + $0x28] sm:$0xf]
        %v431 = vld [vmem:[%s408 + $0x2c] sm:$0xf]
        %v432 = vld [vmem:[%s408 + $0x30] sm:$0xf]
        %v433 = vld [vmem:[%s408 + $0x34] sm:$0xf]
        %v434 = vld [vmem:[%s408 + $0x38] sm:$0xf]
        %v435 = vld [vmem:[%s408 + $0x3c] sm:$0xf]
        %v436 = vld [vmem:[%s408 + $0x40] sm:$0xf]
        %v437 = vld [vmem:[%s408 + $0x44] sm:$0xf]
        %v438 = vld [vmem:[%s408 + $0x48] sm:$0xf]
        %v439 = vld [vmem:[%s408 + $0x4c] sm:$0xf]
        %v440 = vld [vmem:[%s408 + $0x50] sm:$0xf]
        %v441 = vld [vmem:[%s408 + $0x54] sm:$0xf]
        %v442 = vld [vmem:[%s408 + $0x58] sm:$0xf]
        %v443 = vld [vmem:[%s408 + $0x5c] sm:$0xf]
        %v444 = vld [vmem:[%s408 + $0x60] sm:$0xf]
        %v445 = vld [vmem:[%s408 + $0x64] sm:$0xf]
        %v446 = vld [vmem:[%s408 + $0x68] sm:$0xf]
        %v447 = vld [vmem:[%s408 + $0x6c] sm:$0xf]
        %v448 = vld [vmem:[%s408 + $0x70] sm:$0xf]
        %v449 = vld [vmem:[%s408 + $0x74] sm:$0xf]
        %v450 = vld [vmem:[%s408 + $0x78] sm:$0xf]
        %v451 = vld [vmem:[%s408 + $0x7c] sm:$0xf]
        %v452 = vld [vmem:[%s396] sm:$0x3]
        %v453 = vld [vmem:[#allocation2] sm:$0xff]
        %v455 = vunpack.c.l.b16 %v419
        %v456 = vunpack.c.h.b16 %v419
        %v457 = vpack.c.b16 %v455, %v455
        %v458 = vpack.c.b16 %v456, %v456
        %v493 = vunpack.c.l.b16 %v420
        %v494 = vunpack.c.l.b16 %v421
        %v495 = vunpack.c.l.b16 %v422
        %v496 = vunpack.c.l.b16 %v423
        %v497 = vunpack.c.l.b16 %v424
        %v498 = vunpack.c.l.b16 %v425
        %v499 = vunpack.c.l.b16 %v426
        %v500 = vunpack.c.l.b16 %v427
        %v501 = vunpack.c.l.b16 %v428
        %v502 = vunpack.c.l.b16 %v429
        %v503 = vunpack.c.l.b16 %v430
        %v504 = vunpack.c.l.b16 %v431
        %v505 = vunpack.c.l.b16 %v432
        %v506 = vunpack.c.l.b16 %v433
        %v507 = vunpack.c.l.b16 %v434
        %v508 = vunpack.c.l.b16 %v435
        %v509 = vunpack.c.l.b16 %v436
        %v510 = vunpack.c.l.b16 %v437
        %v511 = vunpack.c.l.b16 %v438
        %v512 = vunpack.c.l.b16 %v439
        %v513 = vunpack.c.l.b16 %v440
        %v514 = vunpack.c.l.b16 %v441
        %v515 = vunpack.c.l.b16 %v442
        %v516 = vunpack.c.l.b16 %v443
        %v517 = vunpack.c.l.b16 %v444
        %v518 = vunpack.c.l.b16 %v445
        %v519 = vunpack.c.l.b16 %v446
        %v520 = vunpack.c.l.b16 %v447
        %v521 = vunpack.c.l.b16 %v448
        %v522 = vunpack.c.l.b16 %v449
        %v523 = vunpack.c.l.b16 %v450
        %v524 = vunpack.c.l.b16 %v451
        %v525 = vpack.c.b16 %v494, %v493
        %v526 = vpack.c.b16 %v496, %v495
        %v527 = vpack.c.b16 %v498, %v497
        %v528 = vpack.c.b16 %v500, %v499
        %v529 = vpack.c.b16 %v502, %v501
        %v530 = vpack.c.b16 %v504, %v503
        %v531 = vpack.c.b16 %v506, %v505
        %v532 = vpack.c.b16 %v508, %v507
        %v533 = vpack.c.b16 %v510, %v509
        %v534 = vpack.c.b16 %v512, %v511
        %v535 = vpack.c.b16 %v514, %v513
        %v536 = vpack.c.b16 %v516, %v515
        %v537 = vpack.c.b16 %v518, %v517
        %v538 = vpack.c.b16 %v520, %v519
        %v539 = vpack.c.b16 %v522, %v521
        %v540 = vpack.c.b16 %v524, %v523
        %557 = vmatpush.bf16.msra.mxu0 %v532
        %558 = vmatpush.bf16.msra.mxu0 %v531
        %559 = vmatpush.bf16.msra.mxu0 %v530
        %560 = vmatpush.bf16.msra.mxu0 %v529
        %561 = vmatpush.bf16.msra.mxu0 %v528
        %562 = vmatpush.bf16.msra.mxu0 %v527
        %563 = vmatpush.bf16.msra.mxu0 %v526
        %564 = vmatpush.bf16.msra.mxu0 %v525
        %565 = vmatmul.bf16.gmra.mxu0 %v457
        %v566 = vpop.f32.mrf.mxu0
        %v567 = vadd.f32 0.0, %v566
        %v568 = vpop.f32.mrf.mxu0
        %569 = vdwg.mxu0
        %570 = vmatpush.bf16.msra.mxu0 %v540
        %571 = vmatpush.bf16.msra.mxu0 %v539
        %572 = vmatpush.bf16.msra.mxu0 %v538
        %573 = vmatpush.bf16.msra.mxu0 %v537
        %574 = vmatpush.bf16.msra.mxu0 %v536
        %575 = vmatpush.bf16.msra.mxu0 %v535
        %576 = vmatpush.bf16.msra.mxu0 %v534
        %577 = vmatpush.bf16.msra.mxu0 %v533
        %578 = vmatmul.bf16.gmra.mxu0 %v458
        %v579 = vpop.f32.mrf.mxu0
        %v580 = vadd.f32 %v567, %v579
        %v581 = vpop.f32.mrf.mxu0
        %582 = vdwg.mxu0
        %v583 = vadd.f32 %v453, %v580
        %584 = vst [vmem:[#allocation2] sm:$0xff] %v583
        %v585 = vld [vmem:[#allocation3] sm:$0xff]
        %587 = vst [vmem:[#allocation1] ss:$9 sm:$0xff] %v452
        %v588 = vld [vmem:[#allocation1] sm:$0xff]
        %v589 = vld [vmem:[#allocation1 + $0x9] sm:$0xff]
        %v590 = vpack.i.b16 %v588, %v588
        %v592 = vperm.slane %v590, 0
        %v593 = vpack.i.b16 %v589, %v589
        %v595 = vperm.slane %v593, 0
        %v596 = vunpack.c.l.bf16 %v419
        %v597 = vunpack.c.h.bf16 %v419
        %v598 = vunpack.c.l.bf16 %v592
        %v599 = vunpack.c.l.bf16 %v595
        %v600 = vmul.f32 %v596, %v598
        %v601 = vmul.f32 %v597, %v599
        %v602 = vpack.c.bf16 %v600, %v600
        %v603 = vpack.c.bf16 %v601, %v601
        %604 = vmatpush.bf16.msra.mxu0 %v532
        %605 = vmatpush.bf16.msra.mxu0 %v531
        %606 = vmatpush.bf16.msra.mxu0 %v530
        %607 = vmatpush.bf16.msra.mxu0 %v529
        %608 = vmatpush.bf16.msra.mxu0 %v528
        %609 = vmatpush.bf16.msra.mxu0 %v527
        %610 = vmatpush.bf16.msra.mxu0 %v526
        %611 = vmatpush.bf16.msra.mxu0 %v525
        %612 = vmatmul.bf16.gmra.mxu0 %v602
        %v613 = vpop.f32.mrf.mxu0
        %v614 = vadd.f32 0.0, %v613
        %v615 = vpop.f32.mrf.mxu0
        %616 = vdwg.mxu0
        %617 = vmatpush.bf16.msra.mxu0 %v540
        %618 = vmatpush.bf16.msra.mxu0 %v539
        %619 = vmatpush.bf16.msra.mxu0 %v538
        %620 = vmatpush.bf16.msra.mxu0 %v537
        %621 = vmatpush.bf16.msra.mxu0 %v536
        %622 = vmatpush.bf16.msra.mxu0 %v535
        %623 = vmatpush.bf16.msra.mxu0 %v534
        %624 = vmatpush.bf16.msra.mxu0 %v533
        %625 = vmatmul.bf16.gmra.mxu0 %v603
        %v626 = vpop.f32.mrf.mxu0
        %v627 = vadd.f32 %v614, %v626
        %v628 = vpop.f32.mrf.mxu0
        %629 = vdwg.mxu0
        %v630 = vadd.f32 %v585, %v627
        %631 = vst [vmem:[#allocation3] sm:$0xff] %v630
        %v632 = vld [vmem:[#allocation4] sm:$0xff]
        %v633 = vld [vmem:[%s402] sm:$0xf]
        %v634 = vld [vmem:[%s402 + $0x4] sm:$0xf]
        %v635 = vld [vmem:[%s402 + $0x8] sm:$0xf]
        %v636 = vld [vmem:[%s402 + $0xc] sm:$0xf]
        %v637 = vld [vmem:[%s402 + $0x10] sm:$0xf]
        %v638 = vld [vmem:[%s402 + $0x14] sm:$0xf]
        %v639 = vld [vmem:[%s402 + $0x18] sm:$0xf]
        %v640 = vld [vmem:[%s402 + $0x1c] sm:$0xf]
        %v641 = vld [vmem:[%s402 + $0x20] sm:$0xf]
        %v642 = vld [vmem:[%s402 + $0x24] sm:$0xf]
        %v643 = vld [vmem:[%s402 + $0x28] sm:$0xf]
        %v644 = vld [vmem:[%s402 + $0x2c] sm:$0xf]
        %v645 = vld [vmem:[%s402 + $0x30] sm:$0xf]
        %v646 = vld [vmem:[%s402 + $0x34] sm:$0xf]
        %v647 = vld [vmem:[%s402 + $0x38] sm:$0xf]
        %v648 = vld [vmem:[%s402 + $0x3c] sm:$0xf]
        %v649 = vld [vmem:[%s402 + $0x40] sm:$0xf]
        %v650 = vld [vmem:[%s402 + $0x44] sm:$0xf]
        %v651 = vld [vmem:[%s402 + $0x48] sm:$0xf]
        %v652 = vld [vmem:[%s402 + $0x4c] sm:$0xf]
        %v653 = vld [vmem:[%s402 + $0x50] sm:$0xf]
        %v654 = vld [vmem:[%s402 + $0x54] sm:$0xf]
        %v655 = vld [vmem:[%s402 + $0x58] sm:$0xf]
        %v656 = vld [vmem:[%s402 + $0x5c] sm:$0xf]
        %v657 = vld [vmem:[%s402 + $0x60] sm:$0xf]
        %v658 = vld [vmem:[%s402 + $0x64] sm:$0xf]
        %v659 = vld [vmem:[%s402 + $0x68] sm:$0xf]
        %v660 = vld [vmem:[%s402 + $0x6c] sm:$0xf]
        %v661 = vld [vmem:[%s402 + $0x70] sm:$0xf]
        %v662 = vld [vmem:[%s402 + $0x74] sm:$0xf]
        %v663 = vld [vmem:[%s402 + $0x78] sm:$0xf]
        %v664 = vld [vmem:[%s402 + $0x7c] sm:$0xf]
        %v697 = vunpack.c.l.b16 %v633
        %v698 = vunpack.c.l.b16 %v634
        %v699 = vunpack.c.l.b16 %v635
        %v700 = vunpack.c.l.b16 %v636
        %v701 = vunpack.c.l.b16 %v637
        %v702 = vunpack.c.l.b16 %v638
        %v703 = vunpack.c.l.b16 %v639
        %v704 = vunpack.c.l.b16 %v640
        %v705 = vunpack.c.l.b16 %v641
        %v706 = vunpack.c.l.b16 %v642
        %v707 = vunpack.c.l.b16 %v643
        %v708 = vunpack.c.l.b16 %v644
        %v709 = vunpack.c.l.b16 %v645
        %v710 = vunpack.c.l.b16 %v646
        %v711 = vunpack.c.l.b16 %v647
        %v712 = vunpack.c.l.b16 %v648
        %v713 = vunpack.c.l.b16 %v649
        %v714 = vunpack.c.l.b16 %v650
        %v715 = vunpack.c.l.b16 %v651
        %v716 = vunpack.c.l.b16 %v652
        %v717 = vunpack.c.l.b16 %v653
        %v718 = vunpack.c.l.b16 %v654
        %v719 = vunpack.c.l.b16 %v655
        %v720 = vunpack.c.l.b16 %v656
        %v721 = vunpack.c.l.b16 %v657
        %v722 = vunpack.c.l.b16 %v658
        %v723 = vunpack.c.l.b16 %v659
        %v724 = vunpack.c.l.b16 %v660
        %v725 = vunpack.c.l.b16 %v661
        %v726 = vunpack.c.l.b16 %v662
        %v727 = vunpack.c.l.b16 %v663
        %v728 = vunpack.c.l.b16 %v664
        %v729 = vpack.c.b16 %v698, %v697
        %v730 = vpack.c.b16 %v700, %v699
        %v731 = vpack.c.b16 %v702, %v701
        %v732 = vpack.c.b16 %v704, %v703
        %v733 = vpack.c.b16 %v706, %v705
        %v734 = vpack.c.b16 %v708, %v707
        %v735 = vpack.c.b16 %v710, %v709
        %v736 = vpack.c.b16 %v712, %v711
        %v737 = vpack.c.b16 %v714, %v713
        %v738 = vpack.c.b16 %v716, %v715
        %v739 = vpack.c.b16 %v718, %v717
        %v740 = vpack.c.b16 %v720, %v719
        %v741 = vpack.c.b16 %v722, %v721
        %v742 = vpack.c.b16 %v724, %v723
        %v743 = vpack.c.b16 %v726, %v725
        %v744 = vpack.c.b16 %v728, %v727
        %761 = vmatpush.bf16.msra.mxu0 %v736
        %762 = vmatpush.bf16.msra.mxu0 %v735
        %763 = vmatpush.bf16.msra.mxu0 %v734
        %764 = vmatpush.bf16.msra.mxu0 %v733
        %765 = vmatpush.bf16.msra.mxu0 %v732
        %766 = vmatpush.bf16.msra.mxu0 %v731
        %767 = vmatpush.bf16.msra.mxu0 %v730
        %768 = vmatpush.bf16.msra.mxu0 %v729
        %769 = vmatmul.bf16.gmra.mxu0 %v457
        %v770 = vpop.f32.mrf.mxu0
        %v771 = vadd.f32 0.0, %v770
        %v772 = vpop.f32.mrf.mxu0
        %773 = vdwg.mxu0
        %774 = vmatpush.bf16.msra.mxu0 %v744
        %775 = vmatpush.bf16.msra.mxu0 %v743
        %776 = vmatpush.bf16.msra.mxu0 %v742
        %777 = vmatpush.bf16.msra.mxu0 %v741
        %778 = vmatpush.bf16.msra.mxu0 %v740
        %779 = vmatpush.bf16.msra.mxu0 %v739
        %780 = vmatpush.bf16.msra.mxu0 %v738
        %781 = vmatpush.bf16.msra.mxu0 %v737
        %782 = vmatmul.bf16.gmra.mxu0 %v458
        %v783 = vpop.f32.mrf.mxu0
        %v784 = vadd.f32 %v771, %v783
        %v785 = vpop.f32.mrf.mxu0
        %786 = vdwg.mxu0
        %v787 = vadd.f32 %v632, %v784
        %vm788 = vcmask 64512
        %789 = vst.msk [vmem:[#allocation4] sm:$0xff] %vm788, %v787
        %p790 = scmp.eq.s32.totalorder %s24, 3
        // Predicated region
        $region61: #{_device_forward.1} parent=55 // pred_check
          %p791 = pneg %p790
        $region62: #{_device_forward.1} parent=55 // pred_check_branch
          %793 = sbr.rel (%p791) target = $region64
        $region63: #{_device_forward.1} parent=55 // pred_region
          %v794 = vld [vmem:[%s4] sm:$0x1]
          %v795 = vld [vmem:[%s5] sm:$0xff]
          %v796 = vld [vmem:[%s5 + $0x8] sm:$0xff]
          %v797 = vld [vmem:[%s5 + $0x10] sm:$0xff]
          %v798 = vld [vmem:[%s5 + $0x18] sm:$0xff]
          %v799 = vld [vmem:[%s5 + $0x20] sm:$0xff]
          %v800 = vld [vmem:[%s5 + $0x28] sm:$0xff]
          %v801 = vld [vmem:[%s5 + $0x30] sm:$0xff]
          %v802 = vld [vmem:[%s5 + $0x38] sm:$0xff]
          %v803 = vld [vmem:[%s5 + $0x40] sm:$0xff]
          %v804 = vld [vmem:[%s5 + $0x48] sm:$0xff]
          %v805 = vld [vmem:[%s5 + $0x50] sm:$0xff]
          %v806 = vld [vmem:[%s5 + $0x58] sm:$0xff]
          %v807 = vld [vmem:[%s5 + $0x60] sm:$0xff]
          %v808 = vld [vmem:[%s5 + $0x68] sm:$0xff]
          %v809 = vld [vmem:[%s5 + $0x70] sm:$0xff]
          %v810 = vld [vmem:[%s5 + $0x78] sm:$0xff]
          %v811 = vld [vmem:[%s6] sm:$0x3]
          %v812 = vld [vmem:[#allocation2] sm:$0xff]
          %v814 = vperm.slane %v794, 0
          %v816 = vadd.f32 %v812, %v814
          %v817 = vmax.f32 %v816, 0.0
          %v818 = vpack.c.bf16 %v817, %v817
          %v820 = vperm.slane %v811, 0
          %v821 = vperm.slane %v811, 1
          %v840 = vunpack.c.l.b16 %v795
          %v841 = vunpack.c.h.b16 %v795
          %v842 = vunpack.c.l.b16 %v796
          %v843 = vunpack.c.h.b16 %v796
          %v844 = vunpack.c.l.b16 %v797
          %v845 = vunpack.c.h.b16 %v797
          %v846 = vunpack.c.l.b16 %v798
          %v847 = vunpack.c.h.b16 %v798
          %v848 = vunpack.c.l.b16 %v799
          %v849 = vunpack.c.h.b16 %v799
          %v850 = vunpack.c.l.b16 %v800
          %v851 = vunpack.c.h.b16 %v800
          %v852 = vunpack.c.l.b16 %v801
          %v853 = vunpack.c.h.b16 %v801
          %v854 = vunpack.c.l.b16 %v802
          %v855 = vunpack.c.h.b16 %v802
          %v856 = vunpack.c.l.b16 %v803
          %v857 = vunpack.c.h.b16 %v803
          %v858 = vunpack.c.l.b16 %v804
          %v859 = vunpack.c.h.b16 %v804
          %v860 = vunpack.c.l.b16 %v805
          %v861 = vunpack.c.h.b16 %v805
          %v862 = vunpack.c.l.b16 %v806
          %v863 = vunpack.c.h.b16 %v806
          %v864 = vunpack.c.l.b16 %v807
          %v865 = vunpack.c.h.b16 %v807
          %v866 = vunpack.c.l.b16 %v808
          %v867 = vunpack.c.h.b16 %v808
          %v868 = vunpack.c.l.b16 %v809
          %v869 = vunpack.c.h.b16 %v809
          %v870 = vunpack.c.l.b16 %v810
          %v871 = vunpack.c.h.b16 %v810
          %v872 = vpack.c.b16 %v842, %v840
          %v873 = vpack.c.b16 %v843, %v841
          %v874 = vpack.c.b16 %v846, %v844
          %v875 = vpack.c.b16 %v847, %v845
          %v876 = vpack.c.b16 %v850, %v848
          %v877 = vpack.c.b16 %v851, %v849
          %v878 = vpack.c.b16 %v854, %v852
          %v879 = vpack.c.b16 %v855, %v853
          %v880 = vpack.c.b16 %v858, %v856
          %v881 = vpack.c.b16 %v859, %v857
          %v882 = vpack.c.b16 %v862, %v860
          %v883 = vpack.c.b16 %v863, %v861
          %v884 = vpack.c.b16 %v866, %v864
          %v885 = vpack.c.b16 %v867, %v865
          %v886 = vpack.c.b16 %v870, %v868
          %v887 = vpack.c.b16 %v871, %v869
          %904 = vmatpush.bf16.msra.mxu0 %v886
          %905 = vmatpush.bf16.msra.mxu0 %v884
          %906 = vmatpush.bf16.msra.mxu0 %v882
          %907 = vmatpush.bf16.msra.mxu0 %v880
          %908 = vmatpush.bf16.msra.mxu0 %v878
          %909 = vmatpush.bf16.msra.mxu0 %v876
          %910 = vmatpush.bf16.msra.mxu0 %v874
          %911 = vmatpush.bf16.msra.mxu0 %v872
          %912 = vmatmul.bf16.gmra.mxu0 %v818
          %v913 = vpop.f32.mrf.mxu0
          %v914 = vadd.f32 %v820, %v913
          %v915 = vpop.f32.mrf.mxu0
          %916 = vdwg.mxu0
          %917 = vmatpush.bf16.msra.mxu0 %v887
          %918 = vmatpush.bf16.msra.mxu0 %v885
          %919 = vmatpush.bf16.msra.mxu0 %v883
          %920 = vmatpush.bf16.msra.mxu0 %v881
          %921 = vmatpush.bf16.msra.mxu0 %v879
          %922 = vmatpush.bf16.msra.mxu0 %v877
          %923 = vmatpush.bf16.msra.mxu0 %v875
          %924 = vmatpush.bf16.msra.mxu0 %v873
          %925 = vmatmul.bf16.gmra.mxu0 %v818
          %v926 = vpop.f32.mrf.mxu0
          %v927 = vadd.f32 %v821, %v926
          %v928 = vpop.f32.mrf.mxu0
          %929 = vdwg.mxu0
          %v930 = vmul.f32 %v914, 0.5
          %v931 = vmul.f32 %v927, 0.5
          %v932 = vadd.f32 %v930, %v931
          %v933 = vld [vmem:[#allocation4] sm:$0xff]
          %v934 = vpack.c.bf16 %v933, %v933
          %v935 = vld [vmem:[%s7] sm:$0xf]
          %v937 = vsel %vm788, %v934, 0
          %vm939 = vcmask 1043456
          %v941 = vsel %vm939, %v935, 0
          %943 = vmatpush.bf16.msra.mxu0 0
          %944 = vmatpush.bf16.msra.mxu0 0
          %945 = vmatpush.bf16.msra.mxu0 0
          %946 = vmatpush.bf16.msra.mxu0 0
          %947 = vmatpush.bf16.msra.mxu0 0
          %948 = vmatpush.bf16.msra.mxu0 0
          %949 = vmatpush.bf16.msra.mxu0 0
          %950 = vmatpush.bf16.msra.mxu0 %v941
          %951 = vmatmul.bf16.gmra.mxu0 %v937
          %v952 = vpop.f32.mrf.mxu0
          %v953 = vadd.f32 0.0, %v952
          %v954 = vpop.f32.mrf.mxu0
          %955 = vdwg.mxu0
          %v956 = vld [vmem:[#allocation3] sm:$0xff]
          %v957 = vsub.f32 %v812, %v956
          %v958 = vadd.f32 %v957, %v953
          %v959 = vadd.f32 %v958, %v814
          %v960 = vmax.f32 %v959, 0.0
          %v961 = vpack.c.bf16 %v960, %v960
          %962 = vmatpush.bf16.msra.mxu0 %v886
          %963 = vmatpush.bf16.msra.mxu0 %v884
          %964 = vmatpush.bf16.msra.mxu0 %v882
          %965 = vmatpush.bf16.msra.mxu0 %v880
          %966 = vmatpush.bf16.msra.mxu0 %v878
          %967 = vmatpush.bf16.msra.mxu0 %v876
          %968 = vmatpush.bf16.msra.mxu0 %v874
          %969 = vmatpush.bf16.msra.mxu0 %v872
          %970 = vmatmul.bf16.gmra.mxu0 %v961
          %v971 = vpop.f32.mrf.mxu0
          %v972 = vadd.f32 %v820, %v971
          %v973 = vpop.f32.mrf.mxu0
          %974 = vdwg.mxu0
          %975 = vmatpush.bf16.msra.mxu0 %v887
          %976 = vmatpush.bf16.msra.mxu0 %v885
          %977 = vmatpush.bf16.msra.mxu0 %v883
          %978 = vmatpush.bf16.msra.mxu0 %v881
          %979 = vmatpush.bf16.msra.mxu0 %v879
          %980 = vmatpush.bf16.msra.mxu0 %v877
          %981 = vmatpush.bf16.msra.mxu0 %v875
          %982 = vmatpush.bf16.msra.mxu0 %v873
          %983 = vmatmul.bf16.gmra.mxu0 %v961
          %v984 = vpop.f32.mrf.mxu0
          %v985 = vadd.f32 %v821, %v984
          %v986 = vpop.f32.mrf.mxu0
          %987 = vdwg.mxu0
          %v988 = vmul.f32 %v972, 0.5
          %v989 = vmul.f32 %v985, 0.5
          %v990 = vadd.f32 %v988, %v989
          %v991 = vlaneseq
          %v992 = vand.u32 %v991, 127
          %vm993 = vcmp.lt.s32.totalorder %v992, 10
          %v994 = vsel %vm993, %v932, -1e+30
          %995 = vmax.xlane.f32.xlu0 %v994
          %v996 = vpop.xlane.xlu0 %995
          %v997 = vsub.f32 %v994, %v996
          %v998 = vmul.f32 %v997, 1.442695
          %v999 = vpow.pop %v998
          %1000 = vadd.xlane.f32.xlu0 %v999
          %v1001 = vpop.xlane.xlu0 %1000
          %v1002 = vrcp.pop %v1001
          %v1003 = vmul.f32 %v999, %v1002
          %v1004 = vlog2.pop %v1001
          %v1005 = vmul.f32 %v1004, 0.6931472
          %v1006 = vsub.f32 %v997, %v1005
          %v1007 = vmul.f32 %v1003, %v1006
          %v1008 = vsel %vm993, %v1007, 0.0
          %1009 = vadd.xlane.f32.xlu0 %v1008
          %v1010 = vpop.xlane.xlu0 %1009
          %v1011 = vsub.f32 0.0, %v1010
          %v1012 = vsel %vm993, %v914, -1e+30
          %1013 = vmax.xlane.f32.xlu0 %v1012
          %v1014 = vpop.xlane.xlu0 %1013
          %v1015 = vsub.f32 %v1012, %v1014
          %v1016 = vmul.f32 %v1015, 1.442695
          %v1017 = vpow.pop %v1016
          %1018 = vadd.xlane.f32.xlu0 %v1017
          %v1019 = vpop.xlane.xlu0 %1018
          %v1020 = vrcp.pop %v1019
          %v1021 = vmul.f32 %v1017, %v1020
          %v1022 = vsel %vm993, %v972, -1e+30
          %1023 = vmax.xlane.f32.xlu0 %v1022
          %v1024 = vpop.xlane.xlu0 %1023
          %v1025 = vsub.f32 %v1022, %v1024
          %v1026 = vmul.f32 %v1025, 1.442695
          %v1027 = vpow.pop %v1026
          %1028 = vadd.xlane.f32.xlu0 %v1027
          %v1029 = vpop.xlane.xlu0 %1028
          %v1030 = vrcp.pop %v1029
          %v1031 = vmul.f32 %v1027, %v1030
          %v1032 = vsel %vm993, %v990, -1e+30
          %1033 = vmax.xlane.f32.xlu0 %v1032
          %v1034 = vpop.xlane.xlu0 %1033
          %v1035 = vsub.f32 %v1032, %v1034
          %v1036 = vmul.f32 %v1035, 1.442695
          %v1037 = vpow.pop %v1036
          %1038 = vadd.xlane.f32.xlu0 %v1037
          %v1039 = vpop.xlane.xlu0 %1038
          %v1040 = vrcp.pop %v1039
          %v1041 = vmul.f32 %v1037, %v1040
          %vm1042 = vcmp.eq.f32.partialorder %v1012, %v1014
          %v1043 = vsel %vm1042, %v992, 128
          %v1044 = vand.u32 %v1043, 65535
          %v1045 = vshra.s32 %v1043, 16
          %v1046 = vcvt.s32.f32 %v1044
          %v1047 = vcvt.s32.f32 %v1045
          %1048 = vmin.xlane.f32.xlu0 %v1047
          %v1049 = vpop.xlane.xlu0 %1048
          %vm1050 = vcmp.eq.f32.partialorder %v1047, %v1049
          %v1051 = vsel %vm1050, %v1046, inf
          %1052 = vmin.xlane.f32.xlu0 %v1051
          %v1053 = vpop.xlane.xlu0 %1052
          %v1054 = vcvt.f32.s32 %v1053
          %v1055 = vcvt.f32.s32 %v1049
          %v1056 = vshll.u32 %v1055, 16
          %v1057 = vadd.s32 %v1056, %v1054
          %vm1058 = vcmp.eq.s32.totalorder %v992, %v1057
          %v1059 = vsel %vm1058, 1, 0
          %v1060 = vcvt.s32.f32 %v1059
          %v1061 = vmul.f32 %v1021, %v1060
          %1062 = vadd.xlane.f32.xlu0 %v1061
          %v1063 = vpop.xlane.xlu0 %1062
          %v1064 = vmul.f32 %v1031, %v1060
          %1065 = vadd.xlane.f32.xlu0 %v1064
          %v1066 = vpop.xlane.xlu0 %1065
          %v1067 = vsub.f32 %v1063, %v1066
          %v1068 = vmul.f32 %v1041, %v1060
          %1069 = vadd.xlane.f32.xlu0 %v1068
          %v1070 = vpop.xlane.xlu0 %1069
          %v1071 = vsub.f32 %v1063, %v1070
          %vm1072 = vcmp.lt.f32.partialorder %v1011, 2.763102
          %vm1073 = vcmp.ge.f32.partialorder %v1067, -2.0
          %vm1074 = vmand %vm1072, %vm1073
          %vm1075 = vcmp.ge.f32.partialorder %v1071, -2.0
          %vm1076 = vmand %vm1072, %vm1075
          %v1077 = vsel %vm1072, 1, 0
          %v1078 = vcvt.s32.f32 %v1077
          %v1079 = vsel %vm1074, 1, 0
          %v1080 = vcvt.s32.f32 %v1079
          %v1081 = vsel %vm1076, 1, 0
          %v1082 = vcvt.s32.f32 %v1081
          %vm1083 = vcmask 7168
          %v1084 = vsel %vm1083, %v1078, 0.0
          %1085 = vadd.xlane.f32.xlu0 %v1084
          %v1086 = vpop.xlane.xlu0 %1085
          %v1087 = vrot.slane %v1086, 4
          %v1088 = vadd.f32 %v1086, %v1087
          %v1089 = vrot.slane %v1088, 2
          %v1090 = vadd.f32 %v1088, %v1089
          %v1091 = vrot.slane %v1090, 1
          %v1092 = vadd.f32 %v1090, %v1091
          %s1093 = vtos %v1092
          %v1094 = vsel %vm1083, %v1080, 0.0
          %1095 = vadd.xlane.f32.xlu0 %v1094
          %v1096 = vpop.xlane.xlu0 %1095
          %v1097 = vrot.slane %v1096, 4
          %v1098 = vadd.f32 %v1096, %v1097
          %v1099 = vrot.slane %v1098, 2
          %v1100 = vadd.f32 %v1098, %v1099
          %v1101 = vrot.slane %v1100, 1
          %v1102 = vadd.f32 %v1100, %v1101
          %s1103 = vtos %v1102
          %v1104 = vsel %vm1083, %v1082, 0.0
          %1105 = vadd.xlane.f32.xlu0 %v1104
          %v1106 = vpop.xlane.xlu0 %1105
          %v1107 = vrot.slane %v1106, 4
          %v1108 = vadd.f32 %v1106, %v1107
          %v1109 = vrot.slane %v1108, 2
          %v1110 = vadd.f32 %v1108, %v1109
          %v1111 = vrot.slane %v1110, 1
          %v1112 = vadd.f32 %v1110, %v1111
          %s1113 = vtos %v1112
          %v1114 = vsub.f32 %v1011, 2.763102
          %v1115 = vsub.f32 0.0, %v1114
          %v1116 = vmul.f32 %v1115, 1.442695
          %v1117 = vpow.pop %v1116
          %v1118 = vmul.f32 %v1067, 1.442695
          %v1119 = vpow.pop %v1118
          %v1120 = vadd.f32 %v1117, %v1119
          %v1121 = vmul.f32 %v1011, %v1120
          %v1122 = vmul.f32 %v1121, %v1080
          %v1123 = vsel %vm1083, %v1122, 0.0
          %1124 = vadd.xlane.f32.xlu0 %v1123
          %v1125 = vpop.xlane.xlu0 %1124
          %v1126 = vrot.slane %v1125, 4
          %v1127 = vadd.f32 %v1125, %v1126
          %v1128 = vrot.slane %v1127, 2
          %v1129 = vadd.f32 %v1127, %v1128
          %v1130 = vrot.slane %v1129, 1
          %v1131 = vadd.f32 %v1129, %v1130
          %s1132 = vtos %v1131
          %s1133 = smax.f32 %s1103, 1.0
          %v1134 = vstv %s1133
          %v1135 = vrcp.pop %v1134
          %v1136 = vmul.f32 %v1134, %v1135
          %v1137 = vsub.f32 1.0, %v1136
          %v1138 = vmul.f32 %v1135, %v1137
          %v1139 = vadd.f32 %v1135, %v1138
          %vm1140 = vweird.f32 %v1134
          %vm1141 = vweird.f32 %v1135
          %vm1142 = vmor %vm1140, %vm1141
          %v1143 = vsel %vm1142, %v1135, %v1139
          %v1144 = vand.u32 2147483647, %v1134
          %vm1145 = vcmp.eq.f32.partialorder %v1144, 8.507059e+37
          %v1146 = vand.u32 %v1134, 2147483648
          %v1147 = vor.u32 1.1754944e-38, %v1146
          %v1148 = vsel %vm1145, %v1147, %v1143
          %s1149 = vtos %v1148
          %s1150 = smul.f32 %s1132, %s1149
          %v1151 = vmul.f32 %v1003, %v1080
          %v1152 = vrot.slane %v1151, 4
          %v1153 = vadd.f32 %v1151, %v1152
          %v1154 = vrot.slane %v1153, 2
          %v1155 = vadd.f32 %v1153, %v1154
          %v1156 = vrot.slane %v1155, 1
          %v1157 = vadd.f32 %v1155, %v1156
          %v1158 = vstv %s1133
          %v1159 = vrcp.pop %v1158
          %v1160 = vmul.f32 %v1158, %v1159
          %v1161 = vsub.f32 1.0, %v1160
          %v1162 = vmul.f32 %v1159, %v1161
          %v1163 = vadd.f32 %v1159, %v1162
          %vm1164 = vweird.f32 %v1158
          %vm1165 = vweird.f32 %v1159
          %vm1166 = vmor %vm1164, %vm1165
          %v1167 = vsel %vm1166, %v1159, %v1163
          %v1168 = vand.u32 2147483647, %v1158
          %vm1169 = vcmp.eq.f32.partialorder %v1168, 8.507059e+37
          %v1170 = vand.u32 %v1158, 2147483648
          %v1171 = vor.u32 1.1754944e-38, %v1170
          %v1172 = vsel %vm1169, %v1171, %v1167
          %v1173 = vmul.f32 %v1157, %v1172
          %v1174 = vmul.f32 %v1003, %v1082
          %v1175 = vrot.slane %v1174, 4
          %v1176 = vadd.f32 %v1174, %v1175
          %v1177 = vrot.slane %v1176, 2
          %v1178 = vadd.f32 %v1176, %v1177
          %v1179 = vrot.slane %v1178, 1
          %v1180 = vadd.f32 %v1178, %v1179
          %s1181 = smax.f32 %s1113, 1.0
          %v1182 = vstv %s1181
          %v1183 = vrcp.pop %v1182
          %v1184 = vmul.f32 %v1182, %v1183
          %v1185 = vsub.f32 1.0, %v1184
          %v1186 = vmul.f32 %v1183, %v1185
          %v1187 = vadd.f32 %v1183, %v1186
          %vm1188 = vweird.f32 %v1182
          %vm1189 = vweird.f32 %v1183
          %vm1190 = vmor %vm1188, %vm1189
          %v1191 = vsel %vm1190, %v1183, %v1187
          %v1192 = vand.u32 2147483647, %v1182
          %vm1193 = vcmp.eq.f32.partialorder %v1192, 8.507059e+37
          %v1194 = vand.u32 %v1182, 2147483648
          %v1195 = vor.u32 1.1754944e-38, %v1194
          %v1196 = vsel %vm1193, %v1195, %v1191
          %v1197 = vmul.f32 %v1180, %v1196
          %1198 = vst [vmem:[#allocation5] sm:$0xff] %v932
          %v1199 = vlaneseq
          %v1200 = vshrl.u32 %v1199, 7
          %vm1201 = vcmp.eq.s32.totalorder %v992, 0
          %v1202 = vstv %s1093
          %v1203 = vsel %vm1201, %v1202, 0.0
          %vm1204 = vcmp.eq.s32.totalorder %v992, 1
          %v1205 = vstv %s1103
          %v1206 = vsel %vm1204, %v1205, 0.0
          %v1207 = vadd.f32 %v1203, %v1206
          %vm1208 = vcmp.eq.s32.totalorder %v992, 2
          %v1209 = vsel %vm1208, %v1202, 0.0
          %v1210 = vadd.f32 %v1207, %v1209
          %vm1211 = vcmp.eq.s32.totalorder %v992, 3
          %v1212 = vstv %s1113
          %v1213 = vsel %vm1211, %v1212, 0.0
          %v1214 = vadd.f32 %v1210, %v1213
          %vm1215 = vcmp.eq.s32.totalorder %v992, 4
          %v1216 = vstv %s1150
          %v1217 = vsel %vm1215, %v1216, 0.0
          %v1218 = vadd.f32 %v1214, %v1217
          %vm1219 = vcmp.eq.s32.totalorder %v1200, 0
          %v1220 = vsel %vm1219, %v1173, 0.0
          %vm1221 = vcmp.eq.s32.totalorder %v1200, 1
          %v1222 = vsel %vm1221, %v1197, 0.0
          %v1223 = vadd.f32 %v1220, %v1222
          %vm1224 = vcmp.eq.s32.totalorder %v1200, 2
          %v1225 = vsel %vm1224, %v1218, 0.0
          %v1226 = vadd.f32 %v1223, %v1225
          %1227 = vst [vmem:[#allocation7] sm:$0xff] %v1226
        $region64: #{_device_forward.1} parent=55 // pred_fallthru
          _
        // Predicated region
        $region65: #{_device_forward.1} parent=55 // pred_check
          %p1228 = pneg %p246
        $region66: #{_device_forward.1} parent=55 // pred_check_branch
          %1230 = sbr.rel (%p1228) target = $region68
        $region67: #{_device_forward.1} parent=55 // pred_region
          %1232 = vsyncadd [#allocation6], 0
          %s1234 = sshll.u32 [#allocation5], 4
          %s1235 = int_to_ptr.vmem [resolvable:$true] %s1234
          %s1236 = sshll.u32 %s9, 4
          %s1237 = int_to_ptr.hbm [resolvable:$true] %s1236
          %1239 = dma.vmem_to_hbm [thread:$0]  %s1235, 128, %s1237, [#allocation6]
        $region68: #{_device_forward.1} parent=55 // pred_fallthru
          _
        // Predicated region
        $region69: #{_device_forward.1} parent=55 // pred_check
          %p1240 = pneg %p267
        $region70: #{_device_forward.1} parent=55 // pred_check_branch
          %1242 = sbr.rel (%p1240) target = $region72
        $region71: #{_device_forward.1} parent=55 // pred_region
          %1244 = vsyncadd [#allocation8], 0
          %s1246 = sshll.u32 [#allocation7], 4
          %s1247 = int_to_ptr.vmem [resolvable:$true] %s1246
          %s1248 = sshll.u32 %s10, 4
          %s1249 = int_to_ptr.hbm [resolvable:$true] %s1248
          %1251 = dma.vmem_to_hbm [thread:$0]  %s1247, 128, %s1249, [#allocation8]
        $region72: #{_device_forward.1} parent=55 // pred_fallthru
          _
        // Predicated region
        $region73: #{_device_forward.1} parent=55 // pred_check
          %p1252 = pneg %p246
        $region74: #{_device_forward.1} parent=55 // pred_check_branch
          %1254 = sbr.rel (%p1252) target = $region76
        $region75: #{_device_forward.1} parent=55 // pred_region
          %1256 = dma.done [#allocation6], 128
        $region76: #{_device_forward.1} parent=55 // pred_fallthru
          _
        // Predicated region
        $region77: #{_device_forward.1} parent=55 // pred_check
          %p1257 = pneg %p267
        $region78: #{_device_forward.1} parent=55 // pred_check_branch
          %1259 = sbr.rel (%p1257) target = $region80
        $region79: #{_device_forward.1} parent=55 // pred_region
          %1261 = dma.done [#allocation8], 128
        $region80: #{_device_forward.1} parent=55 // pred_fallthru
          _
      $region56: #{_device_forward.1} parent=5 // pred_fallthru
        _
      %p1262 = scmp.le.s32.totalorder 2, %s19
      // Predicated region
      $region81: #{_device_forward.1} parent=5 // pred_check
        %p1263 = pneg %p1262
      $region82: #{_device_forward.1} parent=5 // pred_check_branch
        %1265 = sbr.rel (%p1263) target = $region84
      $region83: #{_device_forward.1} parent=5 // pred_region
        %s1266 = ssub.s32 %s19, 2
      $region84: #{_device_forward.1} parent=5 // pred_fallthru
        _
    $region6: #{_device_forward.1} parent=1 // loop_footer
      %s23 = sadd.s32 1, %s19
    $region7: #{_device_forward.1} parent=1 // loop_footer_branch
      %18 = sbr.rel target = $region3
    $region8: #{_device_forward.1} parent=1 // loop_exit
      _
    %1267 = vsyncpa [#allocation6], 1
    %s1268 = scalar_lea.sflag [#allocation6], 1
    %1269 = vsyncpa %s1268, 1
    %1270 = vsyncpa [#allocation8], 1

</llo_original>
